<compile_context>
chip_gen: v6e
topology: v6e:2x2x1
jax: 0.10.0
libtpu: 0.0.40
codegen_flags: <defaults>
</compile_context>

<pallas_src>
import functools

import jax
import jax.numpy as jnp
from jax.experimental import pallas as pl
from jax.experimental.pallas import tpu as pltpu

BN_EPS = 1e-5          # PyTorch BatchNorm1d default
NEG_BIG = -1e30        # folded bias for padded columns -> exp() == 0.0 (keep f32!)
LANE = 128
TINY = 1e-30           # clamp for the alphas row sum (avoid inf on total underflow)


def _round_up(n, m):
    return -(-n // m) * m


def _vmem_capacity_bytes():
    """Per-core VMEM capacity; conservative v7x-sized fallback if query fails."""
    try:
        info = pltpu.get_tpu_info()
        cap = getattr(info, "vmem_capacity_bytes", None)
        if cap:
            return int(cap)
    except Exception:
        pass
    return 64 * 1024 * 1024


def _use_bf16_exp():
    """bf16 EUP path exists on v6e/v7x; v5e and older only have the f32 path."""
    try:
        kind = jax.devices()[0].device_kind.lower()
    except Exception:
        return True
    return not any(tag in kind for tag in ("v2", "v3", "v4", "v5"))


def prodlda_kernel(x_ref, w1_ref, b1_ref, w2_ref, b2_ref,
                   wt_ref, bt_ref, wd_ref, bd_ref,
                   out_ref, alpha_ref, *, bf16_exp):
    bf16 = jnp.bfloat16

    # ---- Encoder: two Linear + softplus (dropout = identity in eval) ----
    # x arrives already in bf16 (cast at the pallas_call boundary).
    h1 = jnp.dot(x_ref[...], w1_ref[...],
                 preferred_element_type=jnp.float32) + b1_ref[...]
    h1 = jnp.logaddexp(h1, 0.0)                                  # softplus (f32)
    h2 = jnp.dot(h1.astype(bf16), w2_ref[...],
                 preferred_element_type=jnp.float32) + b2_ref[...]
    h2 = jnp.logaddexp(h2, 0.0)

    # ---- HiddenToDirichlet: Linear (eval BatchNorm pre-folded) -> exp ----
    y = jnp.dot(h2.astype(bf16), wt_ref[...],
                preferred_element_type=jnp.float32) + bt_ref[...]
    alphas = jnp.exp(y)                  # padded topic columns: exp(-1e30) == 0
    alpha_ref[...] = alphas

    # ---- Dirichlet mean + explicit renorm, fused into a single per-row scale ----
    # approx EUP reciprocal, corrected by one exact reciprocal of a [TB,1] scalar.
    s1 = jnp.maximum(jnp.sum(alphas, axis=1, keepdims=True), TINY)
    r1 = pl.reciprocal(s1, approx=True)
    scale = r1 * pl.reciprocal(s1 * r1)
    t = alphas * scale

    # ---- Decoder: Linear (eval BatchNorm pre-folded) -> log_softmax(dim=1) ----
    d = jnp.dot(t.astype(bf16), wd_ref[...],
                preferred_element_type=jnp.float32) + bd_ref[...]
    m = jnp.max(d, axis=1, keepdims=True)
    e = d - m
    if bf16_exp:
        # exp on [TB, Vp] is the EUP-bound part; bf16 EUP doubles its throughput
        # on v6e/v7x. Sum is accumulated in f32.
        p = jnp.exp(e.astype(bf16)).astype(jnp.float32)
    else:
        p = jnp.exp(e)
    lse = m + jnp.log(jnp.sum(p, axis=1, keepdims=True))
    out_ref[...] = d - lse


def prepare_params(p, num_topics):
    """Fold eval-mode BatchNorm into the adjacent Linear, pad the topic AND vocab
    axes to lane multiples (128), and cast matmul weights to bf16 (biases f32)."""
    t_scale = p["t_gamma"] / jnp.sqrt(p["t_var"] + BN_EPS)       # [1, T]
    wt = p["wt"] * t_scale
    bt = (p["bt"] - p["t_mean"]) * t_scale + p["t_beta"]
    d_scale = p["d_gamma"] / jnp.sqrt(p["d_var"] + BN_EPS)       # [1, V]
    wd = p["wd"] * d_scale
    bd = (p["bd"] - p["d_mean"]) * d_scale + p["d_beta"]

    V = p["w1"].shape[0]
    t_pad = _round_up(num_topics, LANE) - num_topics
    v_pad = _round_up(V, LANE) - V

    w1 = jnp.pad(p["w1"], ((0, v_pad), (0, 0)))                  # extra vocab rows: 0
    wt = jnp.pad(wt, ((0, 0), (0, t_pad)))                        # extra topic cols: 0
    bt = jnp.pad(bt, ((0, 0), (0, t_pad)), constant_values=NEG_BIG)   # exp -> 0
    wd = jnp.pad(wd, ((0, t_pad), (0, v_pad)))                    # topic rows / vocab cols: 0
    bd = jnp.pad(bd, ((0, 0), (0, v_pad)), constant_values=NEG_BIG)   # log_softmax ignores

    bf16 = jnp.bfloat16
    return dict(w1=w1.astype(bf16), b1=p["b1"],
                w2=p["w2"].astype(bf16), b2=p["b2"],
                wt=wt.astype(bf16), bt=bt,          # biases stay f32 (exact -1e30)
                wd=wd.astype(bf16), bd=bd)


def prodlda_forward(x, prep, num_topics, bf16_exp=None):
    """x: [B, V] float32. Returns (log_probs [B, V] f32, alphas [B, num_topics] f32)."""
    if bf16_exp is None:
        bf16_exp = _use_bf16_exp()

    B, V = x.shape
    Vp, H = prep["w1"].shape
    Tp = prep["wt"].shape[1]

    vmem_cap = _vmem_capacity_bytes()
    # v5e/v6e (128 MiB VMEM) can afford 512-row tiles; v7x (64 MiB) capped at 256.
    tb_max = 512 if vmem_cap >= 100 * 1024 * 1024 else 256
    # ~cdiv(B, 2) rows per tile so the "parallel" grid has >= 2 steps whenever B
    # allows it (v7x megacore); multiple of 16 for bf16 sublane packing.
    TB = min(tb_max, _round_up(max(-(-B // 2), 16), 16))
    B_pad = _round_up(B, TB)

    xp = x
    if B_pad != B or Vp != V:
        xp = jnp.pad(x, ((0, B_pad - B), (0, Vp - V)))
    xp = xp.astype(jnp.bfloat16)         # half the streaming DMA; f32 accumulation

    weight_names = ("w1", "b1", "w2", "b2", "wt", "bt", "wd", "bd")
    weights = tuple(prep[n] for n in weight_names)

    # VMEM budget: resident weights + double-buffered x/out/alphas tiles
    # + rough in-kernel temporaries + headroom, capped below physical capacity.
    weight_bytes = sum(int(w.size) * w.dtype.itemsize for w in weights)
    stream_bytes = 2 * (TB * Vp * 2 + TB * Vp * 4 + TB * Tp * 4)
    temp_bytes = TB * (2 * Vp + 2 * H + 2 * Tp) * 4
    vmem_limit = 2 * weight_bytes + stream_bytes + temp_bytes + (8 << 20)
    vmem_limit = int(min(max(vmem_limit, 32 << 20), int(0.85 * vmem_cap)))

    kernel = functools.partial(prodlda_kernel, bf16_exp=bf16_exp)

    def run(single_buffer_weights):
        if single_buffer_weights:
            # Constant blocks: keep resident, but do NOT double-buffer them.
            w_specs = [pl.BlockSpec(w.shape, lambda i: (0, 0),
                                    pipeline_mode=pl.Buffered(1))
                       for w in weights]
        else:
            w_specs = [pl.BlockSpec(w.shape, lambda i: (0, 0)) for w in weights]
        return pl.pallas_call(
            kernel,
            grid=(B_pad // TB,),
            in_specs=[pl.BlockSpec((TB, Vp), lambda i: (i, 0))] + w_specs,
            out_specs=(pl.BlockSpec((TB, Vp), lambda i: (i, 0)),
                       pl.BlockSpec((TB, Tp), lambda i: (i, 0))),
            out_shape=(jax.ShapeDtypeStruct((B_pad, Vp), jnp.float32),
                       jax.ShapeDtypeStruct((B_pad, Tp), jnp.float32)),
            compiler_params=pltpu.CompilerParams(
                dimension_semantics=("parallel",),   # megacore sharding on v7x
                vmem_limit_bytes=vmem_limit),
        )(xp, *weights)

    try:
        out, alphas = run(True)
    except Exception:
        # Older jax without BlockSpec(pipeline_mode=...): fall back to default
        # (double-buffered) constant blocks; semantics identical.
        out, alphas = run(False)

    return out[:B, :V], alphas[:B, :num_topics]


def init_params(key, vocab_size, hidden_size, num_topics):
    """PyTorch-like Linear init; BatchNorm params/running stats are randomized
    (as after training) so the BN folding is actually exercised."""
    ks = jax.random.split(key, 16)

    def linear(kw, kb, fan_in, fan_out):
        bound = 1.0 / jnp.sqrt(fan_in)
        w = jax.random.uniform(kw, (fan_in, fan_out), jnp.float32, -bound, bound)
        b = jax.random.uniform(kb, (1, fan_out), jnp.float32, -bound, bound)
        return w, b

    w1, b1 = linear(ks[0], ks[1], vocab_size, hidden_size)
    w2, b2 = linear(ks[2], ks[3], hidden_size, hidden_size)
    wt, bt = linear(ks[4], ks[5], hidden_size, num_topics)
    wd, bd = linear(ks[6], ks[7], num_topics, vocab_size)

    def bn(kg, kb_, km, kv, n):
        gamma = jax.random.uniform(kg, (1, n), jnp.float32, 0.5, 1.5)
        beta = 0.1 * jax.random.normal(kb_, (1, n), jnp.float32)
        mean = 0.1 * jax.random.normal(km, (1, n), jnp.float32)
        var = jax.random.uniform(kv, (1, n), jnp.float32, 0.5, 1.5)
        return gamma, beta, mean, var

    tg, tb_, tm, tv = bn(ks[8], ks[9], ks[10], ks[11], num_topics)
    dg, db_, dm, dv = bn(ks[12], ks[13], ks[14], ks[15], vocab_size)
    return dict(w1=w1, b1=b1, w2=w2, b2=b2,
                wt=wt, bt=bt, t_gamma=tg, t_beta=tb_, t_mean=tm, t_var=tv,
                wd=wd, bd=bd, d_gamma=dg, d_beta=db_, d_mean=dm, d_var=dv)


def prodlda_reference_prepared(x, prep, num_topics, bf16_exp):
    """Pure-JAX reference mirroring the kernel math (folded BN, padding, bf16)."""
    bf16 = jnp.bfloat16
    V = x.shape[1]
    Vp = prep["w1"].shape[0]
    xp = jnp.pad(x, ((0, 0), (0, Vp - V))).astype(bf16)
    h1 = jax.nn.softplus(jnp.dot(xp, prep["w1"],
                                 preferred_element_type=jnp.float32) + prep["b1"])
    h2 = jax.nn.softplus(jnp.dot(h1.astype(bf16), prep["w2"],
                                 preferred_element_type=jnp.float32) + prep["b2"])
    y = jnp.dot(h2.astype(bf16), prep["wt"],
                preferred_element_type=jnp.float32) + prep["bt"]
    alphas = jnp.exp(y)
    t = alphas / alphas.sum(1, keepdims=True)
    t = t / t.sum(1, keepdims=True)
    d = jnp.dot(t.astype(bf16), prep["wd"],
                preferred_element_type=jnp.float32) + prep["bd"]
    m = jnp.max(d, axis=1, keepdims=True)
    e = d - m
    if bf16_exp:
        p = jnp.exp(e.astype(bf16)).astype(jnp.float32)
    else:
        p = jnp.exp(e)
    out = d - (m + jnp.log(jnp.sum(p, axis=1, keepdims=True)))
    return out[:, :V], alphas[:, :num_topics]


def prodlda_reference_f32(x, p):
    """Full-f32, un-folded reference of the PyTorch eval-mode forward."""
    h1 = jax.nn.softplus(x @ p["w1"] + p["b1"])
    h2 = jax.nn.softplus(h1 @ p["w2"] + p["b2"])
    y = h2 @ p["wt"] + p["bt"]
    y = (y - p["t_mean"]) * p["t_gamma"] / jnp.sqrt(p["t_var"] + BN_EPS) + p["t_beta"]
    alphas = jnp.exp(y)
    t = alphas / alphas.sum(1, keepdims=True)
    t = t / t.sum(1, keepdims=True)
    d = t @ p["wd"] + p["bd"]
    d = (d - p["d_mean"]) * p["d_gamma"] / jnp.sqrt(p["d_var"] + BN_EPS) + p["d_beta"]
    return jax.nn.log_softmax(d, axis=1), alphas


if __name__ == "__main__":
    B, V, H, T = 8, 256, 128, 64   # batch, vocab_size, hidden_size, num_topics

    key = jax.random.PRNGKey(0)
    kx, kp = jax.random.split(key)
    x = jax.random.uniform(kx, (B, V), jnp.float32, 0.0, 3.0)  # bag-of-words-ish counts

    raw = init_params(kp, V, H, T)
    prep = prepare_params(raw, T)
    bf16_exp = _use_bf16_exp()

    out, alphas = jax.block_until_ready(prodlda_forward(x, prep, T, bf16_exp=bf16_exp))
    assert out.shape == (B, V) and alphas.shape == (B, T)

    # Tight check vs a reference doing the same math (folded BN, padding, bf16).
    ref_out, ref_alphas = prodlda_reference_prepared(x, prep, T, bf16_exp)
    assert jnp.allclose(out, ref_out, rtol=1e-2, atol=1e-2), "log-softmax output mismatch"
    assert jnp.allclose(alphas, ref_alphas, rtol=1e-2, atol=1e-2), "alphas mismatch"

    # Loose check vs the un-folded f32 spec (difference = bf16 matmul/exp error only).
    spec_out, spec_alphas = prodlda_reference_f32(x, raw)
    assert jnp.allclose(out, spec_out, rtol=0.25, atol=0.25), "f32 spec log-softmax drift"
    assert jnp.allclose(alphas, spec_alphas, rtol=0.25, atol=0.25), "f32 spec alphas drift"

    print("KERNEL_OK")
</pallas_src>

<mosaic_0001>
module attributes {stable_mosaic.version = 11 : i64} {
  func.func @prodlda_kernel(%arg0: i32, %arg1: memref<16x256xbf16, #tpu.memory_space<vmem>>, %arg2: memref<256x128xbf16, #tpu.memory_space<vmem>>, %arg3: memref<1x128xf32, #tpu.memory_space<vmem>>, %arg4: memref<128x128xbf16, #tpu.memory_space<vmem>>, %arg5: memref<1x128xf32, #tpu.memory_space<vmem>>, %arg6: memref<128x128xbf16, #tpu.memory_space<vmem>>, %arg7: memref<1x128xf32, #tpu.memory_space<vmem>>, %arg8: memref<128x256xbf16, #tpu.memory_space<vmem>>, %arg9: memref<1x256xf32, #tpu.memory_space<vmem>>, %arg10: memref<16x256xf32, #tpu.memory_space<vmem>>, %arg11: memref<16x128xf32, #tpu.memory_space<vmem>>) attributes {dimension_semantics = [#tpu.dimension_semantics<parallel>], iteration_bounds = array<i64: 1>, scalar_prefetch = 0 : i64, scratch_operands = 0 : i64, tpu.core_type = #tpu.core_type<tc>, window_params = [{transform_indices = @transform_0, window_bounds = array<i64: 16, 256>}, {pipeline_mode = #tpu.pipeline_mode<synchronous>, transform_indices = @transform_1, window_bounds = array<i64: 256, 128>}, {pipeline_mode = #tpu.pipeline_mode<synchronous>, transform_indices = @transform_2, window_bounds = array<i64: 1, 128>}, {pipeline_mode = #tpu.pipeline_mode<synchronous>, transform_indices = @transform_3, window_bounds = array<i64: 128, 128>}, {pipeline_mode = #tpu.pipeline_mode<synchronous>, transform_indices = @transform_4, window_bounds = array<i64: 1, 128>}, {pipeline_mode = #tpu.pipeline_mode<synchronous>, transform_indices = @transform_5, window_bounds = array<i64: 128, 128>}, {pipeline_mode = #tpu.pipeline_mode<synchronous>, transform_indices = @transform_6, window_bounds = array<i64: 1, 128>}, {pipeline_mode = #tpu.pipeline_mode<synchronous>, transform_indices = @transform_7, window_bounds = array<i64: 128, 256>}, {pipeline_mode = #tpu.pipeline_mode<synchronous>, transform_indices = @transform_8, window_bounds = array<i64: 1, 256>}, {transform_indices = @transform_9, window_bounds = array<i64: 16, 256>}, {transform_indices = @transform_10, window_bounds = array<i64: 16, 128>}]} {
    %c0 = arith.constant 0 : index
    %c0_0 = arith.constant 0 : index
    %0 = vector.load %arg1[%c0, %c0_0] : memref<16x256xbf16, #tpu.memory_space<vmem>>, vector<16x256xbf16>
    %c0_1 = arith.constant 0 : index
    %c0_2 = arith.constant 0 : index
    %1 = vector.load %arg2[%c0_1, %c0_2] : memref<256x128xbf16, #tpu.memory_space<vmem>>, vector<256x128xbf16>
    %cst = arith.constant dense<0.000000e+00> : vector<16x128xf32>
    %2 = tpu.matmul %0, %1, %cst {dimension_numbers = #tpu.dot_dimension_numbers<[1], [0], [0], [1], [0, 0, 1, 1], [], []>} : vector<16x256xbf16>, vector<256x128xbf16>, vector<16x128xf32> -> vector<16x128xf32>
    %c0_3 = arith.constant 0 : index
    %c0_4 = arith.constant 0 : index
    %3 = vector.load %arg3[%c0_3, %c0_4] : memref<1x128xf32, #tpu.memory_space<vmem>>, vector<1x128xf32>
    %4 = vector.broadcast %3 : vector<1x128xf32> to vector<16x128xf32>
    %5 = arith.addf %2, %4 : vector<16x128xf32>
    %cst_5 = arith.constant 0.000000e+00 : f32
    %6 = vector.broadcast %cst_5 : f32 to vector<16x128xf32>
    %7 = arith.maximumf %5, %6 : vector<16x128xf32>
    %8 = vector.broadcast %cst_5 : f32 to vector<16x128xf32>
    %9 = arith.subf %5, %8 : vector<16x128xf32>
    %10 = arith.cmpf one, %9, %9 : vector<16x128xf32>
    %11 = vector.broadcast %cst_5 : f32 to vector<16x128xf32>
    %12 = arith.addf %5, %11 : vector<16x128xf32>
    %13 = math.absf %9 : vector<16x128xf32>
    %cst_6 = arith.constant 0.000000e+00 : f32
    %14 = vector.broadcast %cst_6 : f32 to vector<16x128xf32>
    %15 = arith.subf %14, %13 : vector<16x128xf32>
    %16 = math.exp %15 : vector<16x128xf32>
    %17 = math.log1p %16 : vector<16x128xf32>
    %18 = arith.addf %7, %17 : vector<16x128xf32>
    %19 = arith.select %10, %12, %18 : vector<16x128xi1>, vector<16x128xf32>
    %20 = arith.truncf %19 : vector<16x128xf32> to vector<16x128xbf16>
    %c0_7 = arith.constant 0 : index
    %c0_8 = arith.constant 0 : index
    %21 = vector.load %arg4[%c0_7, %c0_8] : memref<128x128xbf16, #tpu.memory_space<vmem>>, vector<128x128xbf16>
    %cst_9 = arith.constant dense<0.000000e+00> : vector<16x128xf32>
    %22 = tpu.matmul %20, %21, %cst_9 {dimension_numbers = #tpu.dot_dimension_numbers<[1], [0], [0], [1], [0, 0, 1, 1], [], []>} : vector<16x128xbf16>, vector<128x128xbf16>, vector<16x128xf32> -> vector<16x128xf32>
    %c0_10 = arith.constant 0 : index
    %c0_11 = arith.constant 0 : index
    %23 = vector.load %arg5[%c0_10, %c0_11] : memref<1x128xf32, #tpu.memory_space<vmem>>, vector<1x128xf32>
    %24 = vector.broadcast %23 : vector<1x128xf32> to vector<16x128xf32>
    %25 = arith.addf %22, %24 : vector<16x128xf32>
    %cst_12 = arith.constant 0.000000e+00 : f32
    %26 = vector.broadcast %cst_12 : f32 to vector<16x128xf32>
    %27 = arith.maximumf %25, %26 : vector<16x128xf32>
    %28 = vector.broadcast %cst_12 : f32 to vector<16x128xf32>
    %29 = arith.subf %25, %28 : vector<16x128xf32>
    %30 = arith.cmpf one, %29, %29 : vector<16x128xf32>
    %31 = vector.broadcast %cst_12 : f32 to vector<16x128xf32>
    %32 = arith.addf %25, %31 : vector<16x128xf32>
    %33 = math.absf %29 : vector<16x128xf32>
    %cst_13 = arith.constant 0.000000e+00 : f32
    %34 = vector.broadcast %cst_13 : f32 to vector<16x128xf32>
    %35 = arith.subf %34, %33 : vector<16x128xf32>
    %36 = math.exp %35 : vector<16x128xf32>
    %37 = math.log1p %36 : vector<16x128xf32>
    %38 = arith.addf %27, %37 : vector<16x128xf32>
    %39 = arith.select %30, %32, %38 : vector<16x128xi1>, vector<16x128xf32>
    %40 = arith.truncf %39 : vector<16x128xf32> to vector<16x128xbf16>
    %c0_14 = arith.constant 0 : index
    %c0_15 = arith.constant 0 : index
    %41 = vector.load %arg6[%c0_14, %c0_15] : memref<128x128xbf16, #tpu.memory_space<vmem>>, vector<128x128xbf16>
    %cst_16 = arith.constant dense<0.000000e+00> : vector<16x128xf32>
    %42 = tpu.matmul %40, %41, %cst_16 {dimension_numbers = #tpu.dot_dimension_numbers<[1], [0], [0], [1], [0, 0, 1, 1], [], []>} : vector<16x128xbf16>, vector<128x128xbf16>, vector<16x128xf32> -> vector<16x128xf32>
    %c0_17 = arith.constant 0 : index
    %c0_18 = arith.constant 0 : index
    %43 = vector.load %arg7[%c0_17, %c0_18] : memref<1x128xf32, #tpu.memory_space<vmem>>, vector<1x128xf32>
    %44 = vector.broadcast %43 : vector<1x128xf32> to vector<16x128xf32>
    %45 = arith.addf %42, %44 : vector<16x128xf32>
    %46 = math.exp %45 : vector<16x128xf32>
    %c0_19 = arith.constant 0 : index
    %c0_20 = arith.constant 0 : index
    %47 = vector.load %arg11[%c0_19, %c0_20] : memref<16x128xf32, #tpu.memory_space<vmem>>, vector<16x128xf32>
    tpu.vector_store %arg11[%c0_19, %c0_20], %46 {strides = array<i32>} : memref<16x128xf32, #tpu.memory_space<vmem>>, vector<16x128xf32>,
    %cst_21 = arith.constant dense<0.000000e+00> : vector<16xf32>
    %48 = vector.multi_reduction <add>, %46, %cst_21 [1] : vector<16x128xf32> to vector<16xf32>
    %49 = vector.shape_cast %48 : vector<16xf32> to vector<16x1xf32>
    %cst_22 = arith.constant 1.000000e-30 : f32
    %50 = vector.broadcast %cst_22 : f32 to vector<16x1xf32>
    %51 = arith.maximumf %49, %50 : vector<16x1xf32>
    %52 = tpu.reciprocal %51 {approx = true} : vector<16x1xf32> -> vector<16x1xf32>
    %53 = arith.mulf %51, %52 : vector<16x1xf32>
    %54 = tpu.reciprocal %53 : vector<16x1xf32> -> vector<16x1xf32>
    %55 = arith.mulf %52, %54 : vector<16x1xf32>
    %56 = vector.broadcast %55 : vector<16x1xf32> to vector<16x128xf32>
    %57 = arith.mulf %46, %56 : vector<16x128xf32>
    %58 = arith.truncf %57 : vector<16x128xf32> to vector<16x128xbf16>
    %c0_23 = arith.constant 0 : index
    %c0_24 = arith.constant 0 : index
    %59 = vector.load %arg8[%c0_23, %c0_24] : memref<128x256xbf16, #tpu.memory_space<vmem>>, vector<128x256xbf16>
    %cst_25 = arith.constant dense<0.000000e+00> : vector<16x256xf32>
    %60 = tpu.matmul %58, %59, %cst_25 {dimension_numbers = #tpu.dot_dimension_numbers<[1], [0], [0], [1], [0, 0, 1, 1], [], []>} : vector<16x128xbf16>, vector<128x256xbf16>, vector<16x256xf32> -> vector<16x256xf32>
    %c0_26 = arith.constant 0 : index
    %c0_27 = arith.constant 0 : index
    %61 = vector.load %arg9[%c0_26, %c0_27] : memref<1x256xf32, #tpu.memory_space<vmem>>, vector<1x256xf32>
    %62 = vector.broadcast %61 : vector<1x256xf32> to vector<16x256xf32>
    %63 = arith.addf %60, %62 : vector<16x256xf32>
    %cst_28 = arith.constant dense<0xFF800000> : vector<16xf32>
    %64 = vector.multi_reduction <maximumf>, %63, %cst_28 [1] : vector<16x256xf32> to vector<16xf32>
    %65 = vector.shape_cast %64 : vector<16xf32> to vector<16x1xf32>
    %66 = vector.broadcast %65 : vector<16x1xf32> to vector<16x256xf32>
    %67 = arith.subf %63, %66 : vector<16x256xf32>
    %68 = arith.truncf %67 : vector<16x256xf32> to vector<16x256xbf16>
    %69 = math.exp %68 : vector<16x256xbf16>
    %70 = arith.extf %69 : vector<16x256xbf16> to vector<16x256xf32>
    %cst_29 = arith.constant dense<0.000000e+00> : vector<16xf32>
    %71 = vector.multi_reduction <add>, %70, %cst_29 [1] : vector<16x256xf32> to vector<16xf32>
    %72 = vector.shape_cast %71 : vector<16xf32> to vector<16x1xf32>
    %73 = math.log %72 : vector<16x1xf32>
    %74 = arith.addf %65, %73 : vector<16x1xf32>
    %75 = vector.broadcast %74 : vector<16x1xf32> to vector<16x256xf32>
    %76 = arith.subf %63, %75 : vector<16x256xf32>
    %c0_30 = arith.constant 0 : index
    %c0_31 = arith.constant 0 : index
    %77 = vector.load %arg10[%c0_30, %c0_31] : memref<16x256xf32, #tpu.memory_space<vmem>>, vector<16x256xf32>
    tpu.vector_store %arg10[%c0_30, %c0_31], %76 {strides = array<i32>} : memref<16x256xf32, #tpu.memory_space<vmem>>, vector<16x256xf32>,
    return
  }
  func.func @transform_0(%arg0: i32) -> (i32, i32) {
    %c0_i32 = arith.constant 0 : i32
    %c0_i32_0 = arith.constant 0 : i32
    return %arg0, %c0_i32 : i32, i32
  }
  func.func @transform_1(%arg0: i32) -> (i32, i32) {
    %c0_i32 = arith.constant 0 : i32
    %c0_i32_0 = arith.constant 0 : i32
    %c0_i32_1 = arith.constant 0 : i32
    return %c0_i32, %c0_i32_0 : i32, i32
  }
  func.func @transform_2(%arg0: i32) -> (i32, i32) {
    %c0_i32 = arith.constant 0 : i32
    %c0_i32_0 = arith.constant 0 : i32
    %c0_i32_1 = arith.constant 0 : i32
    return %c0_i32, %c0_i32_0 : i32, i32
  }
  func.func @transform_3(%arg0: i32) -> (i32, i32) {
    %c0_i32 = arith.constant 0 : i32
    %c0_i32_0 = arith.constant 0 : i32
    %c0_i32_1 = arith.constant 0 : i32
    return %c0_i32, %c0_i32_0 : i32, i32
  }
  func.func @transform_4(%arg0: i32) -> (i32, i32) {
    %c0_i32 = arith.constant 0 : i32
    %c0_i32_0 = arith.constant 0 : i32
    %c0_i32_1 = arith.constant 0 : i32
    return %c0_i32, %c0_i32_0 : i32, i32
  }
  func.func @transform_5(%arg0: i32) -> (i32, i32) {
    %c0_i32 = arith.constant 0 : i32
    %c0_i32_0 = arith.constant 0 : i32
    %c0_i32_1 = arith.constant 0 : i32
    return %c0_i32, %c0_i32_0 : i32, i32
  }
  func.func @transform_6(%arg0: i32) -> (i32, i32) {
    %c0_i32 = arith.constant 0 : i32
    %c0_i32_0 = arith.constant 0 : i32
    %c0_i32_1 = arith.constant 0 : i32
    return %c0_i32, %c0_i32_0 : i32, i32
  }
  func.func @transform_7(%arg0: i32) -> (i32, i32) {
    %c0_i32 = arith.constant 0 : i32
    %c0_i32_0 = arith.constant 0 : i32
    %c0_i32_1 = arith.constant 0 : i32
    return %c0_i32, %c0_i32_0 : i32, i32
  }
  func.func @transform_8(%arg0: i32) -> (i32, i32) {
    %c0_i32 = arith.constant 0 : i32
    %c0_i32_0 = arith.constant 0 : i32
    %c0_i32_1 = arith.constant 0 : i32
    return %c0_i32, %c0_i32_0 : i32, i32
  }
  func.func @transform_9(%arg0: i32) -> (i32, i32) {
    %c0_i32 = arith.constant 0 : i32
    %c0_i32_0 = arith.constant 0 : i32
    return %arg0, %c0_i32 : i32, i32
  }
  func.func @transform_10(%arg0: i32) -> (i32, i32) {
    %c0_i32 = arith.constant 0 : i32
    %c0_i32_0 = arith.constant 0 : i32
    return %arg0, %c0_i32 : i32, i32
  }
}

module attributes {stable_mosaic.version = 11 : i64} {
  func.func @prodlda_kernel(%arg0: i32, %arg1: memref<16x256xbf16, #tpu.memory_space<vmem>>, %arg2: memref<256x128xbf16, #tpu.memory_space<vmem>>, %arg3: memref<1x128xf32, #tpu.memory_space<vmem>>, %arg4: memref<128x128xbf16, #tpu.memory_space<vmem>>, %arg5: memref<1x128xf32, #tpu.memory_space<vmem>>, %arg6: memref<128x128xbf16, #tpu.memory_space<vmem>>, %arg7: memref<1x128xf32, #tpu.memory_space<vmem>>, %arg8: memref<128x256xbf16, #tpu.memory_space<vmem>>, %arg9: memref<1x256xf32, #tpu.memory_space<vmem>>, %arg10: memref<16x256xf32, #tpu.memory_space<vmem>>, %arg11: memref<16x128xf32, #tpu.memory_space<vmem>>) attributes {dimension_semantics = [#tpu.dimension_semantics<parallel>], iteration_bounds = array<i64: 1>, scalar_prefetch = 0 : i64, scratch_operands = 0 : i64, tpu.core_type = #tpu.core_type<tc>, window_params = [{transform_indices = @transform_0, window_bounds = array<i64: 16, 256>}, {pipeline_mode = #tpu.pipeline_mode<synchronous>, transform_indices = @transform_1, window_bounds = array<i64: 256, 128>}, {pipeline_mode = #tpu.pipeline_mode<synchronous>, transform_indices = @transform_2, window_bounds = array<i64: 1, 128>}, {pipeline_mode = #tpu.pipeline_mode<synchronous>, transform_indices = @transform_3, window_bounds = array<i64: 128, 128>}, {pipeline_mode = #tpu.pipeline_mode<synchronous>, transform_indices = @transform_4, window_bounds = array<i64: 1, 128>}, {pipeline_mode = #tpu.pipeline_mode<synchronous>, transform_indices = @transform_5, window_bounds = array<i64: 128, 128>}, {pipeline_mode = #tpu.pipeline_mode<synchronous>, transform_indices = @transform_6, window_bounds = array<i64: 1, 128>}, {pipeline_mode = #tpu.pipeline_mode<synchronous>, transform_indices = @transform_7, window_bounds = array<i64: 128, 256>}, {pipeline_mode = #tpu.pipeline_mode<synchronous>, transform_indices = @transform_8, window_bounds = array<i64: 1, 256>}, {transform_indices = @transform_9, window_bounds = array<i64: 16, 256>}, {transform_indices = @transform_10, window_bounds = array<i64: 16, 128>}]} {
    %c0 = arith.constant 0 : index
    %c0_0 = arith.constant 0 : index
    %0 = vector.load %arg1[%c0, %c0_0] : memref<16x256xbf16, #tpu.memory_space<vmem>>, vector<16x256xbf16>
    %c0_1 = arith.constant 0 : index
    %c0_2 = arith.constant 0 : index
    %1 = vector.load %arg2[%c0_1, %c0_2] : memref<256x128xbf16, #tpu.memory_space<vmem>>, vector<256x128xbf16>
    %cst = arith.constant dense<0.000000e+00> : vector<16x128xf32>
    %2 = tpu.matmul %0, %1, %cst {dimension_numbers = #tpu.dot_dimension_numbers<[1], [0], [0], [1], [0, 0, 1, 1], [], []>} : vector<16x256xbf16>, vector<256x128xbf16>, vector<16x128xf32> -> vector<16x128xf32>
    %c0_3 = arith.constant 0 : index
    %c0_4 = arith.constant 0 : index
    %3 = vector.load %arg3[%c0_3, %c0_4] : memref<1x128xf32, #tpu.memory_space<vmem>>, vector<1x128xf32>
    %4 = vector.broadcast %3 : vector<1x128xf32> to vector<16x128xf32>
    %5 = arith.addf %2, %4 : vector<16x128xf32>
    %cst_5 = arith.constant 0.000000e+00 : f32
    %6 = vector.broadcast %cst_5 : f32 to vector<16x128xf32>
    %7 = arith.maximumf %5, %6 : vector<16x128xf32>
    %8 = vector.broadcast %cst_5 : f32 to vector<16x128xf32>
    %9 = arith.subf %5, %8 : vector<16x128xf32>
    %10 = arith.cmpf one, %9, %9 : vector<16x128xf32>
    %11 = vector.broadcast %cst_5 : f32 to vector<16x128xf32>
    %12 = arith.addf %5, %11 : vector<16x128xf32>
    %13 = math.absf %9 : vector<16x128xf32>
    %cst_6 = arith.constant 0.000000e+00 : f32
    %14 = vector.broadcast %cst_6 : f32 to vector<16x128xf32>
    %15 = arith.subf %14, %13 : vector<16x128xf32>
    %16 = math.exp %15 : vector<16x128xf32>
    %17 = math.log1p %16 : vector<16x128xf32>
    %18 = arith.addf %7, %17 : vector<16x128xf32>
    %19 = arith.select %10, %12, %18 : vector<16x128xi1>, vector<16x128xf32>
    %20 = arith.truncf %19 : vector<16x128xf32> to vector<16x128xbf16>
    %c0_7 = arith.constant 0 : index
    %c0_8 = arith.constant 0 : index
    %21 = vector.load %arg4[%c0_7, %c0_8] : memref<128x128xbf16, #tpu.memory_space<vmem>>, vector<128x128xbf16>
    %cst_9 = arith.constant dense<0.000000e+00> : vector<16x128xf32>
    %22 = tpu.matmul %20, %21, %cst_9 {dimension_numbers = #tpu.dot_dimension_numbers<[1], [0], [0], [1], [0, 0, 1, 1], [], []>} : vector<16x128xbf16>, vector<128x128xbf16>, vector<16x128xf32> -> vector<16x128xf32>
    %c0_10 = arith.constant 0 : index
    %c0_11 = arith.constant 0 : index
    %23 = vector.load %arg5[%c0_10, %c0_11] : memref<1x128xf32, #tpu.memory_space<vmem>>, vector<1x128xf32>
    %24 = vector.broadcast %23 : vector<1x128xf32> to vector<16x128xf32>
    %25 = arith.addf %22, %24 : vector<16x128xf32>
    %cst_12 = arith.constant 0.000000e+00 : f32
    %26 = vector.broadcast %cst_12 : f32 to vector<16x128xf32>
    %27 = arith.maximumf %25, %26 : vector<16x128xf32>
    %28 = vector.broadcast %cst_12 : f32 to vector<16x128xf32>
    %29 = arith.subf %25, %28 : vector<16x128xf32>
    %30 = arith.cmpf one, %29, %29 : vector<16x128xf32>
    %31 = vector.broadcast %cst_12 : f32 to vector<16x128xf32>
    %32 = arith.addf %25, %31 : vector<16x128xf32>
    %33 = math.absf %29 : vector<16x128xf32>
    %cst_13 = arith.constant 0.000000e+00 : f32
    %34 = vector.broadcast %cst_13 : f32 to vector<16x128xf32>
    %35 = arith.subf %34, %33 : vector<16x128xf32>
    %36 = math.exp %35 : vector<16x128xf32>
    %37 = math.log1p %36 : vector<16x128xf32>
    %38 = arith.addf %27, %37 : vector<16x128xf32>
    %39 = arith.select %30, %32, %38 : vector<16x128xi1>, vector<16x128xf32>
    %40 = arith.truncf %39 : vector<16x128xf32> to vector<16x128xbf16>
    %c0_14 = arith.constant 0 : index
    %c0_15 = arith.constant 0 : index
    %41 = vector.load %arg6[%c0_14, %c0_15] : memref<128x128xbf16, #tpu.memory_space<vmem>>, vector<128x128xbf16>
    %cst_16 = arith.constant dense<0.000000e+00> : vector<16x128xf32>
    %42 = tpu.matmul %40, %41, %cst_16 {dimension_numbers = #tpu.dot_dimension_numbers<[1], [0], [0], [1], [0, 0, 1, 1], [], []>} : vector<16x128xbf16>, vector<128x128xbf16>, vector<16x128xf32> -> vector<16x128xf32>
    %c0_17 = arith.constant 0 : index
    %c0_18 = arith.constant 0 : index
    %43 = vector.load %arg7[%c0_17, %c0_18] : memref<1x128xf32, #tpu.memory_space<vmem>>, vector<1x128xf32>
    %44 = vector.broadcast %43 : vector<1x128xf32> to vector<16x128xf32>
    %45 = arith.addf %42, %44 : vector<16x128xf32>
    %46 = math.exp %45 : vector<16x128xf32>
    %c0_19 = arith.constant 0 : index
    %c0_20 = arith.constant 0 : index
    %47 = vector.load %arg11[%c0_19, %c0_20] : memref<16x128xf32, #tpu.memory_space<vmem>>, vector<16x128xf32>
    tpu.vector_store %arg11[%c0_19, %c0_20], %46 {strides = array<i32>} : memref<16x128xf32, #tpu.memory_space<vmem>>, vector<16x128xf32>,
    %cst_21 = arith.constant dense<0.000000e+00> : vector<16xf32>
    %48 = vector.multi_reduction <add>, %46, %cst_21 [1] : vector<16x128xf32> to vector<16xf32>
    %49 = vector.shape_cast %48 : vector<16xf32> to vector<16x1xf32>
    %cst_22 = arith.constant 1.000000e-30 : f32
    %50 = vector.broadcast %cst_22 : f32 to vector<16x1xf32>
    %51 = arith.maximumf %49, %50 : vector<16x1xf32>
    %52 = tpu.reciprocal %51 {approx = true} : vector<16x1xf32> -> vector<16x1xf32>
    %53 = arith.mulf %51, %52 : vector<16x1xf32>
    %54 = tpu.reciprocal %53 : vector<16x1xf32> -> vector<16x1xf32>
    %55 = arith.mulf %52, %54 : vector<16x1xf32>
    %56 = vector.broadcast %55 : vector<16x1xf32> to vector<16x128xf32>
    %57 = arith.mulf %46, %56 : vector<16x128xf32>
    %58 = arith.truncf %57 : vector<16x128xf32> to vector<16x128xbf16>
    %c0_23 = arith.constant 0 : index
    %c0_24 = arith.constant 0 : index
    %59 = vector.load %arg8[%c0_23, %c0_24] : memref<128x256xbf16, #tpu.memory_space<vmem>>, vector<128x256xbf16>
    %cst_25 = arith.constant dense<0.000000e+00> : vector<16x256xf32>
    %60 = tpu.matmul %58, %59, %cst_25 {dimension_numbers = #tpu.dot_dimension_numbers<[1], [0], [0], [1], [0, 0, 1, 1], [], []>} : vector<16x128xbf16>, vector<128x256xbf16>, vector<16x256xf32> -> vector<16x256xf32>
    %c0_26 = arith.constant 0 : index
    %c0_27 = arith.constant 0 : index
    %61 = vector.load %arg9[%c0_26, %c0_27] : memref<1x256xf32, #tpu.memory_space<vmem>>, vector<1x256xf32>
    %62 = vector.broadcast %61 : vector<1x256xf32> to vector<16x256xf32>
    %63 = arith.addf %60, %62 : vector<16x256xf32>
    %cst_28 = arith.constant dense<0xFF800000> : vector<16xf32>
    %64 = vector.multi_reduction <maximumf>, %63, %cst_28 [1] : vector<16x256xf32> to vector<16xf32>
    %65 = vector.shape_cast %64 : vector<16xf32> to vector<16x1xf32>
    %66 = vector.broadcast %65 : vector<16x1xf32> to vector<16x256xf32>
    %67 = arith.subf %63, %66 : vector<16x256xf32>
    %68 = arith.truncf %67 : vector<16x256xf32> to vector<16x256xbf16>
    %69 = math.exp %68 : vector<16x256xbf16>
    %70 = arith.extf %69 : vector<16x256xbf16> to vector<16x256xf32>
    %cst_29 = arith.constant dense<0.000000e+00> : vector<16xf32>
    %71 = vector.multi_reduction <add>, %70, %cst_29 [1] : vector<16x256xf32> to vector<16xf32>
    %72 = vector.shape_cast %71 : vector<16xf32> to vector<16x1xf32>
    %73 = math.log %72 : vector<16x1xf32>
    %74 = arith.addf %65, %73 : vector<16x1xf32>
    %75 = vector.broadcast %74 : vector<16x1xf32> to vector<16x256xf32>
    %76 = arith.subf %63, %75 : vector<16x256xf32>
    %c0_30 = arith.constant 0 : index
    %c0_31 = arith.constant 0 : index
    %77 = vector.load %arg10[%c0_30, %c0_31] : memref<16x256xf32, #tpu.memory_space<vmem>>, vector<16x256xf32>
    tpu.vector_store %arg10[%c0_30, %c0_31], %76 {strides = array<i32>} : memref<16x256xf32, #tpu.memory_space<vmem>>, vector<16x256xf32>,
    return
  }
  func.func @transform_0(%arg0: i32) -> (i32, i32) {
    %c0_i32 = arith.constant 0 : i32
    %c0_i32_0 = arith.constant 0 : i32
    return %arg0, %c0_i32 : i32, i32
  }
  func.func @transform_1(%arg0: i32) -> (i32, i32) {
    %c0_i32 = arith.constant 0 : i32
    %c0_i32_0 = arith.constant 0 : i32
    %c0_i32_1 = arith.constant 0 : i32
    return %c0_i32, %c0_i32_0 : i32, i32
  }
  func.func @transform_2(%arg0: i32) -> (i32, i32) {
    %c0_i32 = arith.constant 0 : i32
    %c0_i32_0 = arith.constant 0 : i32
    %c0_i32_1 = arith.constant 0 : i32
    return %c0_i32, %c0_i32_0 : i32, i32
  }
  func.func @transform_3(%arg0: i32) -> (i32, i32) {
    %c0_i32 = arith.constant 0 : i32
    %c0_i32_0 = arith.constant 0 : i32
    %c0_i32_1 = arith.constant 0 : i32
    return %c0_i32, %c0_i32_0 : i32, i32
  }
  func.func @transform_4(%arg0: i32) -> (i32, i32) {
    %c0_i32 = arith.constant 0 : i32
    %c0_i32_0 = arith.constant 0 : i32
    %c0_i32_1 = arith.constant 0 : i32
    return %c0_i32, %c0_i32_0 : i32, i32
  }
  func.func @transform_5(%arg0: i32) -> (i32, i32) {
    %c0_i32 = arith.constant 0 : i32
    %c0_i32_0 = arith.constant 0 : i32
    %c0_i32_1 = arith.constant 0 : i32
    return %c0_i32, %c0_i32_0 : i32, i32
  }
  func.func @transform_6(%arg0: i32) -> (i32, i32) {
    %c0_i32 = arith.constant 0 : i32
    %c0_i32_0 = arith.constant 0 : i32
    %c0_i32_1 = arith.constant 0 : i32
    return %c0_i32, %c0_i32_0 : i32, i32
  }
  func.func @transform_7(%arg0: i32) -> (i32, i32) {
    %c0_i32 = arith.constant 0 : i32
    %c0_i32_0 = arith.constant 0 : i32
    %c0_i32_1 = arith.constant 0 : i32
    return %c0_i32, %c0_i32_0 : i32, i32
  }
  func.func @transform_8(%arg0: i32) -> (i32, i32) {
    %c0_i32 = arith.constant 0 : i32
    %c0_i32_0 = arith.constant 0 : i32
    %c0_i32_1 = arith.constant 0 : i32
    return %c0_i32, %c0_i32_0 : i32, i32
  }
  func.func @transform_9(%arg0: i32) -> (i32, i32) {
    %c0_i32 = arith.constant 0 : i32
    %c0_i32_0 = arith.constant 0 : i32
    return %arg0, %c0_i32 : i32, i32
  }
  func.func @transform_10(%arg0: i32) -> (i32, i32) {
    %c0_i32 = arith.constant 0 : i32
    %c0_i32_0 = arith.constant 0 : i32
    return %arg0, %c0_i32 : i32, i32
  }
}

</mosaic_0001>

<llo_original>
// kernel: tpu_custom_call.1
$region0: #{tpu_custom_call.1}
  #allocation0 [shape = 'u32[]', space=smem, size = 0x4, offset = 0x4, fixed_abs, tag = 'smem constant byte address 0x4 - core index']
  #allocation1 [shape = 'u32[144,128]{1,0:T(1,128)}', space=vmem, size = 0x12000, scoped, tag = 'internal scratch']
  %s0 = inlined_call_operand.hbm [shape: bf16[16,256], index: 0, kind: input, shape index: {}]
  %s1 = inlined_call_operand.hbm [shape: bf16[256,128], index: 1, kind: input, shape index: {}]
  %s2 = inlined_call_operand.vmem [shape: f32[1,128], index: 2, kind: input, shape index: {}]
  %s3 = inlined_call_operand.hbm [shape: bf16[128,128], index: 3, kind: input, shape index: {}]
  %s4 = inlined_call_operand.vmem [shape: f32[1,128], index: 4, kind: input, shape index: {}]
  %s5 = inlined_call_operand.hbm [shape: bf16[128,128], index: 5, kind: input, shape index: {}]
  %s6 = inlined_call_operand.vmem [shape: f32[1,128], index: 6, kind: input, shape index: {}]
  %s7 = inlined_call_operand.hbm [shape: bf16[128,256], index: 7, kind: input, shape index: {}]
  %s8 = inlined_call_operand.vmem [shape: f32[1,256], index: 8, kind: input, shape index: {}]
  %s9 = inlined_call_operand.hbm [shape: f32[16,256], index: 9, kind: output, shape index: {0}]
  %s10 = inlined_call_operand.hbm [shape: f32[16,128], index: 10, kind: output, shape index: {1}]
  %11 = xla_tuple %s9, %s10
  %s12 = sld [smem:[#allocation0]]
  $region74: #{tpu_custom_call.1} parent=0
    _
  %s14 = ssub.s32 1, %s12
  %s15 = scalar_select 0, %s14, %s12
  $region1: #{tpu_custom_call.1} parent=0
    #allocation2 [shape = 'u8[8192]{0}', space=vmem, size = 0x2000, scoped, tag = 'input window, operand 0, single buffered']
    #allocation3 [shape = 's32[1]{0}', space=sflag, size = 0x4, scoped, tag = 'scoped memory for tpu_custom_call.1']
    #allocation4 [shape = 's32[1]{0}', space=sflag, size = 0x4, scoped, tag = 'scoped memory for tpu_custom_call.1']
    #allocation5 [shape = 'u8[65536]{0}', space=vmem, size = 0x10000, scoped, tag = 'input window, operand 1, single buffered']
    #allocation6 [shape = 's32[1]{0}', space=sflag, size = 0x4, scoped, tag = 'scoped memory for tpu_custom_call.1']
    #allocation7 [shape = 'u8[32768]{0}', space=vmem, size = 0x8000, scoped, tag = 'input window, operand 3, single buffered']
    #allocation8 [shape = 'u8[32768]{0}', space=vmem, size = 0x8000, scoped, tag = 'input window, operand 5, single buffered']
    #allocation9 [shape = 's32[1]{0}', space=sflag, size = 0x4, scoped, tag = 'scoped memory for tpu_custom_call.1']
    #allocation10 [shape = 'u8[65536]{0}', space=vmem, size = 0x10000, scoped, tag = 'input window, operand 7, single buffered']
    #allocation11 [shape = 'u8[16384]{0}', space=vmem, size = 0x4000, scoped, tag = 'output window, operand 0, single buffered']
    #allocation12 [shape = 'u8[8192]{0}', space=vmem, size = 0x2000, scoped, tag = 'output window, operand 1, single buffered']
    #allocation13 [shape = 's32[1]{0}', space=sflag, size = 0x4, scoped, tag = 'scoped memory for tpu_custom_call.1']
    %16 = vsyncpa [#allocation3], 0
    %17 = vsyncpa [#allocation6], 0
    %18 = vsyncpa [#allocation9], 0
    %19 = vsyncpa [#allocation4], 0
    %20 = vsyncpa [#allocation13], 0
    // Predicated region
    $region2: #{tpu_custom_call.1} parent=1 // pred_check
      _
    $region3: #{tpu_custom_call.1} parent=1 // pred_check_branch
      %22 = sbr.rel (0) target = $region5
    $region4: #{tpu_custom_call.1} parent=1 // pred_region
      %s24 = ssub.s32 256, 256
      %25 = vsyncadd [#allocation3], %s24
      %s26 = sshll.u32 [#allocation2], 4
      %s27 = int_to_ptr.vmem [resolvable:$true] %s26
      %32 = dma.hbm_to_vmem [thread:$0]  %s0, 256, %s27, [#allocation3], 128, 128, 8
    $region5: #{tpu_custom_call.1} parent=1 // pred_fallthru
      _
    // Predicated region
    $region6: #{tpu_custom_call.1} parent=1 // pred_check
      _
    $region7: #{tpu_custom_call.1} parent=1 // pred_check_branch
      %34 = sbr.rel (0) target = $region9
    $region8: #{tpu_custom_call.1} parent=1 // pred_region
      %s36 = ssub.s32 2048, 2048
      %37 = vsyncadd [#allocation6], %s36
      %s38 = sshll.u32 [#allocation5], 4
      %s39 = int_to_ptr.vmem [resolvable:$true] %s38
      %44 = dma.hbm_to_vmem [thread:$0]  %s1, 2048, %s39, [#allocation6], 64, 64, 4
    $region9: #{tpu_custom_call.1} parent=1 // pred_fallthru
      _
    // Predicated region
    $region10: #{tpu_custom_call.1} parent=1 // pred_check
      _
    $region11: #{tpu_custom_call.1} parent=1 // pred_check_branch
      %46 = sbr.rel (0) target = $region13
    $region12: #{tpu_custom_call.1} parent=1 // pred_region
      _
    $region13: #{tpu_custom_call.1} parent=1 // pred_fallthru
      _
    // Predicated region
    $region14: #{tpu_custom_call.1} parent=1 // pred_check
      _
    $region15: #{tpu_custom_call.1} parent=1 // pred_check_branch
      %48 = sbr.rel (0) target = $region17
    $region16: #{tpu_custom_call.1} parent=1 // pred_region
      %s50 = ssub.s32 1024, 1024
      %51 = vsyncadd [#allocation6], %s50
      %s52 = sshll.u32 [#allocation7], 4
      %s53 = int_to_ptr.vmem [resolvable:$true] %s52
      %58 = dma.hbm_to_vmem [thread:$0]  %s3, 1024, %s53, [#allocation6], 64, 64, 4
    $region17: #{tpu_custom_call.1} parent=1 // pred_fallthru
      _
    // Predicated region
    $region18: #{tpu_custom_call.1} parent=1 // pred_check
      _
    $region19: #{tpu_custom_call.1} parent=1 // pred_check_branch
      %60 = sbr.rel (0) target = $region21
    $region20: #{tpu_custom_call.1} parent=1 // pred_region
      _
    $region21: #{tpu_custom_call.1} parent=1 // pred_fallthru
      _
    // Predicated region
    $region22: #{tpu_custom_call.1} parent=1 // pred_check
      _
    $region23: #{tpu_custom_call.1} parent=1 // pred_check_branch
      %62 = sbr.rel (0) target = $region25
    $region24: #{tpu_custom_call.1} parent=1 // pred_region
      %s64 = ssub.s32 1024, 1024
      %65 = vsyncadd [#allocation9], %s64
      %s66 = sshll.u32 [#allocation8], 4
      %s67 = int_to_ptr.vmem [resolvable:$true] %s66
      %72 = dma.hbm_to_vmem [thread:$0]  %s5, 1024, %s67, [#allocation9], 64, 64, 4
    $region25: #{tpu_custom_call.1} parent=1 // pred_fallthru
      _
    // Predicated region
    $region26: #{tpu_custom_call.1} parent=1 // pred_check
      _
    $region27: #{tpu_custom_call.1} parent=1 // pred_check_branch
      %74 = sbr.rel (0) target = $region29
    $region28: #{tpu_custom_call.1} parent=1 // pred_region
      _
    $region29: #{tpu_custom_call.1} parent=1 // pred_fallthru
      _
    // Predicated region
    $region30: #{tpu_custom_call.1} parent=1 // pred_check
      _
    $region31: #{tpu_custom_call.1} parent=1 // pred_check_branch
      %76 = sbr.rel (0) target = $region33
    $region32: #{tpu_custom_call.1} parent=1 // pred_region
      %s78 = ssub.s32 2048, 2048
      %79 = vsyncadd [#allocation9], %s78
      %s80 = sshll.u32 [#allocation10], 4
      %s81 = int_to_ptr.vmem [resolvable:$true] %s80
      %86 = dma.hbm_to_vmem [thread:$0]  %s7, 2048, %s81, [#allocation9], 128, 128, 8
    $region33: #{tpu_custom_call.1} parent=1 // pred_fallthru
      _
    // Predicated region
    $region34: #{tpu_custom_call.1} parent=1 // pred_check
      _
    $region35: #{tpu_custom_call.1} parent=1 // pred_check_branch
      %88 = sbr.rel (0) target = $region37
    $region36: #{tpu_custom_call.1} parent=1 // pred_region
      _
    $region37: #{tpu_custom_call.1} parent=1 // pred_fallthru
      _
    // Predicated region
    $region38: #{tpu_custom_call.1} parent=1 // pred_check
      _
    $region39: #{tpu_custom_call.1} parent=1 // pred_check_branch
      %90 = sbr.rel (0) target = $region41
    $region40: #{tpu_custom_call.1} parent=1 // pred_region
      %91 = dma.done [#allocation3], 256
    $region41: #{tpu_custom_call.1} parent=1 // pred_fallthru
      _
    // Predicated region
    $region42: #{tpu_custom_call.1} parent=1 // pred_check
      _
    $region43: #{tpu_custom_call.1} parent=1 // pred_check_branch
      %93 = sbr.rel (0) target = $region45
    $region44: #{tpu_custom_call.1} parent=1 // pred_region
      %94 = dma.done [#allocation6], 2048
    $region45: #{tpu_custom_call.1} parent=1 // pred_fallthru
      _
    // Predicated region
    $region46: #{tpu_custom_call.1} parent=1 // pred_check
      _
    $region47: #{tpu_custom_call.1} parent=1 // pred_check_branch
      %96 = sbr.rel (0) target = $region49
    $region48: #{tpu_custom_call.1} parent=1 // pred_region
      %97 = dma.done [#allocation6], 1024
    $region49: #{tpu_custom_call.1} parent=1 // pred_fallthru
      _
    // Predicated region
    $region50: #{tpu_custom_call.1} parent=1 // pred_check
      _
    $region51: #{tpu_custom_call.1} parent=1 // pred_check_branch
      %99 = sbr.rel (0) target = $region53
    $region52: #{tpu_custom_call.1} parent=1 // pred_region
      %100 = dma.done [#allocation9], 1024
    $region53: #{tpu_custom_call.1} parent=1 // pred_fallthru
      _
    // Predicated region
    $region54: #{tpu_custom_call.1} parent=1 // pred_check
      _
    $region55: #{tpu_custom_call.1} parent=1 // pred_check_branch
      %102 = sbr.rel (0) target = $region57
    $region56: #{tpu_custom_call.1} parent=1 // pred_region
      %103 = dma.done [#allocation9], 2048
    $region57: #{tpu_custom_call.1} parent=1 // pred_fallthru
      _
    %v105 = vld [vmem:[#allocation2] sm:$0xff]
    %v106 = vld [vmem:[#allocation2 + $0x8] sm:$0xff]
    %v107 = vld [vmem:[#allocation5] sm:$0xf]
    %v108 = vld [vmem:[#allocation5 + $0x4] sm:$0xf]
    %v109 = vld [vmem:[#allocation5 + $0x8] sm:$0xf]
    %v110 = vld [vmem:[#allocation5 + $0xc] sm:$0xf]
    %v111 = vld [vmem:[#allocation5 + $0x10] sm:$0xf]
    %v112 = vld [vmem:[#allocation5 + $0x14] sm:$0xf]
    %v113 = vld [vmem:[#allocation5 + $0x18] sm:$0xf]
    %v114 = vld [vmem:[#allocation5 + $0x1c] sm:$0xf]
    %v115 = vld [vmem:[#allocation5 + $0x20] sm:$0xf]
    %v116 = vld [vmem:[#allocation5 + $0x24] sm:$0xf]
    %v117 = vld [vmem:[#allocation5 + $0x28] sm:$0xf]
    %v118 = vld [vmem:[#allocation5 + $0x2c] sm:$0xf]
    %v119 = vld [vmem:[#allocation5 + $0x30] sm:$0xf]
    %v120 = vld [vmem:[#allocation5 + $0x34] sm:$0xf]
    %v121 = vld [vmem:[#allocation5 + $0x38] sm:$0xf]
    %v122 = vld [vmem:[#allocation5 + $0x3c] sm:$0xf]
    %v123 = vld [vmem:[#allocation5 + $0x40] sm:$0xf]
    %v124 = vld [vmem:[#allocation5 + $0x44] sm:$0xf]
    %v125 = vld [vmem:[#allocation5 + $0x48] sm:$0xf]
    %v126 = vld [vmem:[#allocation5 + $0x4c] sm:$0xf]
    %v127 = vld [vmem:[#allocation5 + $0x50] sm:$0xf]
    %v128 = vld [vmem:[#allocation5 + $0x54] sm:$0xf]
    %v129 = vld [vmem:[#allocation5 + $0x58] sm:$0xf]
    %v130 = vld [vmem:[#allocation5 + $0x5c] sm:$0xf]
    %v131 = vld [vmem:[#allocation5 + $0x60] sm:$0xf]
    %v132 = vld [vmem:[#allocation5 + $0x64] sm:$0xf]
    %v133 = vld [vmem:[#allocation5 + $0x68] sm:$0xf]
    %v134 = vld [vmem:[#allocation5 + $0x6c] sm:$0xf]
    %v135 = vld [vmem:[#allocation5 + $0x70] sm:$0xf]
    %v136 = vld [vmem:[#allocation5 + $0x74] sm:$0xf]
    %v137 = vld [vmem:[#allocation5 + $0x78] sm:$0xf]
    %v138 = vld [vmem:[#allocation5 + $0x7c] sm:$0xf]
    %v139 = vld [vmem:[%s2] sm:$0x1]
    %v141 = vlaneseq
    %v142 = vshrl.u32 %v141, 7
    %v143 = vsub.s32 0, %v142
    %v144 = vrot.slane %v139, %v143
    %v148 = vunpack.c.l.b16 %v105
    %v149 = vunpack.c.h.b16 %v105
    %v150 = vunpack.c.l.b16 %v106
    %v151 = vunpack.c.h.b16 %v106
    %v152 = vpack.c.b16 %v150, %v148
    %v153 = vpack.c.b16 %v151, %v149
    %v188 = vunpack.c.l.b16 %v107
    %v189 = vunpack.c.l.b16 %v108
    %v190 = vunpack.c.l.b16 %v109
    %v191 = vunpack.c.l.b16 %v110
    %v192 = vunpack.c.l.b16 %v111
    %v193 = vunpack.c.l.b16 %v112
    %v194 = vunpack.c.l.b16 %v113
    %v195 = vunpack.c.l.b16 %v114
    %v196 = vunpack.c.l.b16 %v115
    %v197 = vunpack.c.l.b16 %v116
    %v198 = vunpack.c.l.b16 %v117
    %v199 = vunpack.c.l.b16 %v118
    %v200 = vunpack.c.l.b16 %v119
    %v201 = vunpack.c.l.b16 %v120
    %v202 = vunpack.c.l.b16 %v121
    %v203 = vunpack.c.l.b16 %v122
    %v204 = vunpack.c.l.b16 %v123
    %v205 = vunpack.c.l.b16 %v124
    %v206 = vunpack.c.l.b16 %v125
    %v207 = vunpack.c.l.b16 %v126
    %v208 = vunpack.c.l.b16 %v127
    %v209 = vunpack.c.l.b16 %v128
    %v210 = vunpack.c.l.b16 %v129
    %v211 = vunpack.c.l.b16 %v130
    %v212 = vunpack.c.l.b16 %v131
    %v213 = vunpack.c.l.b16 %v132
    %v214 = vunpack.c.l.b16 %v133
    %v215 = vunpack.c.l.b16 %v134
    %v216 = vunpack.c.l.b16 %v135
    %v217 = vunpack.c.l.b16 %v136
    %v218 = vunpack.c.l.b16 %v137
    %v219 = vunpack.c.l.b16 %v138
    %v220 = vpack.c.b16 %v189, %v188
    %v221 = vpack.c.b16 %v191, %v190
    %v222 = vpack.c.b16 %v193, %v192
    %v223 = vpack.c.b16 %v195, %v194
    %v224 = vpack.c.b16 %v197, %v196
    %v225 = vpack.c.b16 %v199, %v198
    %v226 = vpack.c.b16 %v201, %v200
    %v227 = vpack.c.b16 %v203, %v202
    %v228 = vpack.c.b16 %v205, %v204
    %v229 = vpack.c.b16 %v207, %v206
    %v230 = vpack.c.b16 %v209, %v208
    %v231 = vpack.c.b16 %v211, %v210
    %v232 = vpack.c.b16 %v213, %v212
    %v233 = vpack.c.b16 %v215, %v214
    %v234 = vpack.c.b16 %v217, %v216
    %v235 = vpack.c.b16 %v219, %v218
    %252 = vmatprep.subr.bf16.mxu0 0
    %253 = vmatpush1.bf16.msra.mxu0 %v227
    %254 = vmatprep.subr.bf16.mxu0 0
    %255 = vmatpush1.bf16.msra.mxu0 %v226
    %256 = vmatprep.subr.bf16.mxu0 0
    %257 = vmatpush1.bf16.msra.mxu0 %v225
    %258 = vmatprep.subr.bf16.mxu0 0
    %259 = vmatpush1.bf16.msra.mxu0 %v224
    %260 = vmatprep.subr.bf16.mxu0 0
    %261 = vmatpush1.bf16.msra.mxu0 %v223
    %262 = vmatprep.subr.bf16.mxu0 0
    %263 = vmatpush1.bf16.msra.mxu0 %v222
    %264 = vmatprep.subr.bf16.mxu0 0
    %265 = vmatpush1.bf16.msra.mxu0 %v221
    %266 = vmatprep.subr.bf16.mxu0 0
    %267 = vmatpush1.bf16.msra.mxu0 %v220
    %268 = vmatprep.subr.bf16.mxu0 0
    %269 = vmatpush2.bf16.msra.mxu0 %v235
    %270 = vmatprep.subr.bf16.mxu0 0
    %271 = vmatpush2.bf16.msra.mxu0 %v234
    %272 = vmatprep.subr.bf16.mxu0 0
    %273 = vmatpush2.bf16.msra.mxu0 %v233
    %274 = vmatprep.subr.bf16.mxu0 0
    %275 = vmatpush2.bf16.msra.mxu0 %v232
    %276 = vmatprep.subr.bf16.mxu0 0
    %277 = vmatpush2.bf16.msra.mxu0 %v231
    %278 = vmatprep.subr.bf16.mxu0 0
    %279 = vmatpush2.bf16.msra.mxu0 %v230
    %280 = vmatprep.subr.bf16.mxu0 0
    %281 = vmatpush2.bf16.msra.mxu0 %v229
    %282 = vmatprep.subr.bf16.mxu0 0
    %283 = vmatpush2.bf16.msra.mxu0 %v228
    %284 = vmatprep.mubr.bf16.mxu0 %v153
    %285 = vmatmul.mubr.bf16.gmra.mxu0 %v152
    %v286 = vpop.f32.mrf.mxu0
    %v287 = vadd.f32 %v144, %v286
    %v288 = vpop.f32.mrf.mxu0
    %v289 = vpop.f32.mrf.mxu0
    %v290 = vadd.f32 %v144, %v289
    %v291 = vpop.f32.mrf.mxu0
    %292 = vdwg.mxu0
    %v293 = vmax.f32 %v287, 0.0
    %v294 = vmax.f32 %v290, 0.0
    %vm295 = vcmp.ne.f32.partialorder %v287, %v287
    %vm296 = vcmp.ne.f32.partialorder %v290, %v290
    %v297 = vadd.f32 %v287, 0.0
    %v298 = vadd.f32 %v290, 0.0
    %v299 = vand.u32 2147483647, %v287
    %v300 = vand.u32 2147483647, %v290
    %v301 = vsub.f32 0.0, %v299
    %v302 = vsub.f32 0.0, %v300
    %v303 = vmul.f32 %v301, 1.442695
    %v304 = vpow.pop %v303
    %v305 = vmul.f32 %v302, 1.442695
    %v306 = vpow.pop %v305
    %v307 = vadd.f32 %v304, 1.0
    %v308 = vlog2.pop %v307
    %v309 = vmul.f32 %v308, 0.6931472
    %v310 = vmul.f32 -0.5, %v304
    %v311 = vadd.f32 %v310, 1.0
    %v312 = vmul.f32 %v311, %v304
    %v313 = vand.u32 2147483647, %v304
    %vm314 = vcmp.lt.f32.partialorder %v313, 0.0004427343
    %v315 = vsel %vm314, %v312, %v309
    %v316 = vadd.f32 %v306, 1.0
    %v317 = vlog2.pop %v316
    %v318 = vmul.f32 %v317, 0.6931472
    %v319 = vmul.f32 -0.5, %v306
    %v320 = vadd.f32 %v319, 1.0
    %v321 = vmul.f32 %v320, %v306
    %v322 = vand.u32 2147483647, %v306
    %vm323 = vcmp.lt.f32.partialorder %v322, 0.0004427343
    %v324 = vsel %vm323, %v321, %v318
    %v325 = vadd.f32 %v293, %v315
    %v326 = vadd.f32 %v294, %v324
    %v327 = vsel %vm295, %v297, %v325
    %v328 = vsel %vm296, %v298, %v326
    %v329 = vpack.c.bf16 %v328, %v327
    %v330 = vld [vmem:[#allocation7] sm:$0xf]
    %v331 = vld [vmem:[#allocation7 + $0x4] sm:$0xf]
    %v332 = vld [vmem:[#allocation7 + $0x8] sm:$0xf]
    %v333 = vld [vmem:[#allocation7 + $0xc] sm:$0xf]
    %v334 = vld [vmem:[#allocation7 + $0x10] sm:$0xf]
    %v335 = vld [vmem:[#allocation7 + $0x14] sm:$0xf]
    %v336 = vld [vmem:[#allocation7 + $0x18] sm:$0xf]
    %v337 = vld [vmem:[#allocation7 + $0x1c] sm:$0xf]
    %v338 = vld [vmem:[#allocation7 + $0x20] sm:$0xf]
    %v339 = vld [vmem:[#allocation7 + $0x24] sm:$0xf]
    %v340 = vld [vmem:[#allocation7 + $0x28] sm:$0xf]
    %v341 = vld [vmem:[#allocation7 + $0x2c] sm:$0xf]
    %v342 = vld [vmem:[#allocation7 + $0x30] sm:$0xf]
    %v343 = vld [vmem:[#allocation7 + $0x34] sm:$0xf]
    %v344 = vld [vmem:[#allocation7 + $0x38] sm:$0xf]
    %v345 = vld [vmem:[#allocation7 + $0x3c] sm:$0xf]
    %v346 = vld [vmem:[%s4] sm:$0x1]
    %v348 = vlaneseq
    %v349 = vshrl.u32 %v348, 7
    %v350 = vsub.s32 0, %v349
    %v351 = vrot.slane %v346, %v350
    %v369 = vunpack.c.l.b16 %v330
    %v370 = vunpack.c.l.b16 %v331
    %v371 = vunpack.c.l.b16 %v332
    %v372 = vunpack.c.l.b16 %v333
    %v373 = vunpack.c.l.b16 %v334
    %v374 = vunpack.c.l.b16 %v335
    %v375 = vunpack.c.l.b16 %v336
    %v376 = vunpack.c.l.b16 %v337
    %v377 = vunpack.c.l.b16 %v338
    %v378 = vunpack.c.l.b16 %v339
    %v379 = vunpack.c.l.b16 %v340
    %v380 = vunpack.c.l.b16 %v341
    %v381 = vunpack.c.l.b16 %v342
    %v382 = vunpack.c.l.b16 %v343
    %v383 = vunpack.c.l.b16 %v344
    %v384 = vunpack.c.l.b16 %v345
    %v385 = vpack.c.b16 %v370, %v369
    %v386 = vpack.c.b16 %v372, %v371
    %v387 = vpack.c.b16 %v374, %v373
    %v388 = vpack.c.b16 %v376, %v375
    %v389 = vpack.c.b16 %v378, %v377
    %v390 = vpack.c.b16 %v380, %v379
    %v391 = vpack.c.b16 %v382, %v381
    %v392 = vpack.c.b16 %v384, %v383
    %401 = vmatprep.subr.bf16.mxu0 0
    %402 = vmatpush1.bf16.msra.mxu0 %v392
    %403 = vmatprep.subr.bf16.mxu0 0
    %404 = vmatpush1.bf16.msra.mxu0 %v391
    %405 = vmatprep.subr.bf16.mxu0 0
    %406 = vmatpush1.bf16.msra.mxu0 %v390
    %407 = vmatprep.subr.bf16.mxu0 0
    %408 = vmatpush1.bf16.msra.mxu0 %v389
    %409 = vmatprep.subr.bf16.mxu0 0
    %410 = vmatpush1.bf16.msra.mxu0 %v388
    %411 = vmatprep.subr.bf16.mxu0 0
    %412 = vmatpush1.bf16.msra.mxu0 %v387
    %413 = vmatprep.subr.bf16.mxu0 0
    %414 = vmatpush1.bf16.msra.mxu0 %v386
    %415 = vmatprep.subr.bf16.mxu0 0
    %416 = vmatpush1.bf16.msra.mxu0 %v385
    %417 = vmatprep.subr.bf16.mxu0 0
    %418 = vmatpush2.bf16.msra.mxu0 0
    %419 = vmatprep.subr.bf16.mxu0 0
    %420 = vmatpush2.bf16.msra.mxu0 0
    %421 = vmatprep.subr.bf16.mxu0 0
    %422 = vmatpush2.bf16.msra.mxu0 0
    %423 = vmatprep.subr.bf16.mxu0 0
    %424 = vmatpush2.bf16.msra.mxu0 0
    %425 = vmatprep.subr.bf16.mxu0 0
    %426 = vmatpush2.bf16.msra.mxu0 0
    %427 = vmatprep.subr.bf16.mxu0 0
    %428 = vmatpush2.bf16.msra.mxu0 0
    %429 = vmatprep.subr.bf16.mxu0 0
    %430 = vmatpush2.bf16.msra.mxu0 0
    %431 = vmatprep.subr.bf16.mxu0 0
    %432 = vmatpush2.bf16.msra.mxu0 0
    %433 = vmatprep.mubr.bf16.mxu0 0
    %434 = vmatmul.mubr.bf16.gmra.mxu0 %v329
    %v435 = vpop.f32.mrf.mxu0
    %v436 = vadd.f32 %v351, %v435
    %v437 = vpop.f32.mrf.mxu0
    %v438 = vpop.f32.mrf.mxu0
    %v439 = vadd.f32 %v351, %v438
    %v440 = vpop.f32.mrf.mxu0
    %441 = vdwg.mxu0
    %v442 = vmax.f32 %v436, 0.0
    %v443 = vmax.f32 %v439, 0.0
    %vm444 = vcmp.ne.f32.partialorder %v436, %v436
    %vm445 = vcmp.ne.f32.partialorder %v439, %v439
    %v446 = vadd.f32 %v436, 0.0
    %v447 = vadd.f32 %v439, 0.0
    %v448 = vand.u32 2147483647, %v436
    %v449 = vand.u32 2147483647, %v439
    %v450 = vsub.f32 0.0, %v448
    %v451 = vsub.f32 0.0, %v449
    %v452 = vmul.f32 %v450, 1.442695
    %v453 = vpow.pop %v452
    %v454 = vmul.f32 %v451, 1.442695
    %v455 = vpow.pop %v454
    %v456 = vadd.f32 %v453, 1.0
    %v457 = vlog2.pop %v456
    %v458 = vmul.f32 %v457, 0.6931472
    %v459 = vmul.f32 -0.5, %v453
    %v460 = vadd.f32 %v459, 1.0
    %v461 = vmul.f32 %v460, %v453
    %v462 = vand.u32 2147483647, %v453
    %vm463 = vcmp.lt.f32.partialorder %v462, 0.0004427343
    %v464 = vsel %vm463, %v461, %v458
    %v465 = vadd.f32 %v455, 1.0
    %v466 = vlog2.pop %v465
    %v467 = vmul.f32 %v466, 0.6931472
    %v468 = vmul.f32 -0.5, %v455
    %v469 = vadd.f32 %v468, 1.0
    %v470 = vmul.f32 %v469, %v455
    %v471 = vand.u32 2147483647, %v455
    %vm472 = vcmp.lt.f32.partialorder %v471, 0.0004427343
    %v473 = vsel %vm472, %v470, %v467
    %v474 = vadd.f32 %v442, %v464
    %v475 = vadd.f32 %v443, %v473
    %v476 = vsel %vm444, %v446, %v474
    %v477 = vsel %vm445, %v447, %v475
    %v478 = vpack.c.bf16 %v477, %v476
    %v479 = vld [vmem:[#allocation8] sm:$0xf]
    %v480 = vld [vmem:[#allocation8 + $0x4] sm:$0xf]
    %v481 = vld [vmem:[#allocation8 + $0x8] sm:$0xf]
    %v482 = vld [vmem:[#allocation8 + $0xc] sm:$0xf]
    %v483 = vld [vmem:[#allocation8 + $0x10] sm:$0xf]
    %v484 = vld [vmem:[#allocation8 + $0x14] sm:$0xf]
    %v485 = vld [vmem:[#allocation8 + $0x18] sm:$0xf]
    %v486 = vld [vmem:[#allocation8 + $0x1c] sm:$0xf]
    %v487 = vld [vmem:[#allocation8 + $0x20] sm:$0xf]
    %v488 = vld [vmem:[#allocation8 + $0x24] sm:$0xf]
    %v489 = vld [vmem:[#allocation8 + $0x28] sm:$0xf]
    %v490 = vld [vmem:[#allocation8 + $0x2c] sm:$0xf]
    %v491 = vld [vmem:[#allocation8 + $0x30] sm:$0xf]
    %v492 = vld [vmem:[#allocation8 + $0x34] sm:$0xf]
    %v493 = vld [vmem:[#allocation8 + $0x38] sm:$0xf]
    %v494 = vld [vmem:[#allocation8 + $0x3c] sm:$0xf]
    %v495 = vld [vmem:[%s6] sm:$0x1]
    %v497 = vlaneseq
    %v498 = vshrl.u32 %v497, 7
    %v499 = vsub.s32 0, %v498
    %v500 = vrot.slane %v495, %v499
    %v518 = vunpack.c.l.b16 %v479
    %v519 = vunpack.c.l.b16 %v480
    %v520 = vunpack.c.l.b16 %v481
    %v521 = vunpack.c.l.b16 %v482
    %v522 = vunpack.c.l.b16 %v483
    %v523 = vunpack.c.l.b16 %v484
    %v524 = vunpack.c.l.b16 %v485
    %v525 = vunpack.c.l.b16 %v486
    %v526 = vunpack.c.l.b16 %v487
    %v527 = vunpack.c.l.b16 %v488
    %v528 = vunpack.c.l.b16 %v489
    %v529 = vunpack.c.l.b16 %v490
    %v530 = vunpack.c.l.b16 %v491
    %v531 = vunpack.c.l.b16 %v492
    %v532 = vunpack.c.l.b16 %v493
    %v533 = vunpack.c.l.b16 %v494
    %v534 = vpack.c.b16 %v519, %v518
    %v535 = vpack.c.b16 %v521, %v520
    %v536 = vpack.c.b16 %v523, %v522
    %v537 = vpack.c.b16 %v525, %v524
    %v538 = vpack.c.b16 %v527, %v526
    %v539 = vpack.c.b16 %v529, %v528
    %v540 = vpack.c.b16 %v531, %v530
    %v541 = vpack.c.b16 %v533, %v532
    %550 = vmatprep.subr.bf16.mxu0 0
    %551 = vmatpush1.bf16.msra.mxu0 %v541
    %552 = vmatprep.subr.bf16.mxu0 0
    %553 = vmatpush1.bf16.msra.mxu0 %v540
    %554 = vmatprep.subr.bf16.mxu0 0
    %555 = vmatpush1.bf16.msra.mxu0 %v539
    %556 = vmatprep.subr.bf16.mxu0 0
    %557 = vmatpush1.bf16.msra.mxu0 %v538
    %558 = vmatprep.subr.bf16.mxu0 0
    %559 = vmatpush1.bf16.msra.mxu0 %v537
    %560 = vmatprep.subr.bf16.mxu0 0
    %561 = vmatpush1.bf16.msra.mxu0 %v536
    %562 = vmatprep.subr.bf16.mxu0 0
    %563 = vmatpush1.bf16.msra.mxu0 %v535
    %564 = vmatprep.subr.bf16.mxu0 0
    %565 = vmatpush1.bf16.msra.mxu0 %v534
    %566 = vmatprep.subr.bf16.mxu0 0
    %567 = vmatpush2.bf16.msra.mxu0 0
    %568 = vmatprep.subr.bf16.mxu0 0
    %569 = vmatpush2.bf16.msra.mxu0 0
    %570 = vmatprep.subr.bf16.mxu0 0
    %571 = vmatpush2.bf16.msra.mxu0 0
    %572 = vmatprep.subr.bf16.mxu0 0
    %573 = vmatpush2.bf16.msra.mxu0 0
    %574 = vmatprep.subr.bf16.mxu0 0
    %575 = vmatpush2.bf16.msra.mxu0 0
    %576 = vmatprep.subr.bf16.mxu0 0
    %577 = vmatpush2.bf16.msra.mxu0 0
    %578 = vmatprep.subr.bf16.mxu0 0
    %579 = vmatpush2.bf16.msra.mxu0 0
    %580 = vmatprep.subr.bf16.mxu0 0
    %581 = vmatpush2.bf16.msra.mxu0 0
    %582 = vmatprep.mubr.bf16.mxu0 0
    %583 = vmatmul.mubr.bf16.gmra.mxu0 %v478
    %v584 = vpop.f32.mrf.mxu0
    %v585 = vadd.f32 %v500, %v584
    %v586 = vpop.f32.mrf.mxu0
    %v587 = vpop.f32.mrf.mxu0
    %v588 = vadd.f32 %v500, %v587
    %v589 = vpop.f32.mrf.mxu0
    %590 = vdwg.mxu0
    %v591 = vmul.f32 %v585, 1.442695
    %v592 = vpow.pop %v591
    %v593 = vmul.f32 %v588, 1.442695
    %v594 = vpow.pop %v593
    %595 = vst [vmem:[#allocation12] sm:$0xff] %v592
    %596 = vst [vmem:[#allocation12 + $0x8] sm:$0xff] %v594
    %597 = vadd.xlane.f32.xlu0 %v592
    %v598 = vpop.xlane.xlu0 %597
    %599 = vadd.xlane.f32.xlu0 %v594
    %v600 = vpop.xlane.xlu0 %599
    %v601 = vmax.f32 %v598, 1e-30
    %v602 = vmax.f32 %v600, 1e-30
    %v603 = vrcp.pop %v601
    %v604 = vrcp.pop %v602
    %v605 = vmul.f32 %v601, %v603
    %v606 = vmul.f32 %v602, %v604
    %v607 = vrcp.pop %v605
    %v608 = vrcp.pop %v606
    %v609 = vmul.f32 %v603, %v607
    %v610 = vmul.f32 %v604, %v608
    %v611 = vmul.f32 %v592, %v609
    %v612 = vmul.f32 %v594, %v610
    %v613 = vpack.c.bf16 %v612, %v611
    %v614 = vld [vmem:[#allocation10] sm:$0xff]
    %v615 = vld [vmem:[#allocation10 + $0x8] sm:$0xff]
    %v616 = vld [vmem:[#allocation10 + $0x10] sm:$0xff]
    %v617 = vld [vmem:[#allocation10 + $0x18] sm:$0xff]
    %v618 = vld [vmem:[#allocation10 + $0x20] sm:$0xff]
    %v619 = vld [vmem:[#allocation10 + $0x28] sm:$0xff]
    %v620 = vld [vmem:[#allocation10 + $0x30] sm:$0xff]
    %v621 = vld [vmem:[#allocation10 + $0x38] sm:$0xff]
    %v622 = vld [vmem:[#allocation10 + $0x40] sm:$0xff]
    %v623 = vld [vmem:[#allocation10 + $0x48] sm:$0xff]
    %v624 = vld [vmem:[#allocation10 + $0x50] sm:$0xff]
    %v625 = vld [vmem:[#allocation10 + $0x58] sm:$0xff]
    %v626 = vld [vmem:[#allocation10 + $0x60] sm:$0xff]
    %v627 = vld [vmem:[#allocation10 + $0x68] sm:$0xff]
    %v628 = vld [vmem:[#allocation10 + $0x70] sm:$0xff]
    %v629 = vld [vmem:[#allocation10 + $0x78] sm:$0xff]
    %v630 = vld [vmem:[%s8] sm:$0x3]
    %v632 = vlaneseq
    %v633 = vshrl.u32 %v632, 7
    %v634 = vsub.s32 0, %v633
    %v635 = vrot.slane %v630, %v634
    %v636 = vlaneseq
    %v637 = vshrl.u32 %v636, 7
    %v638 = vsub.s32 1, %v637
    %v639 = vrot.slane %v630, %v638
    %v658 = vunpack.c.l.b16 %v614
    %v659 = vunpack.c.h.b16 %v614
    %v660 = vunpack.c.l.b16 %v615
    %v661 = vunpack.c.h.b16 %v615
    %v662 = vunpack.c.l.b16 %v616
    %v663 = vunpack.c.h.b16 %v616
    %v664 = vunpack.c.l.b16 %v617
    %v665 = vunpack.c.h.b16 %v617
    %v666 = vunpack.c.l.b16 %v618
    %v667 = vunpack.c.h.b16 %v618
    %v668 = vunpack.c.l.b16 %v619
    %v669 = vunpack.c.h.b16 %v619
    %v670 = vunpack.c.l.b16 %v620
    %v671 = vunpack.c.h.b16 %v620
    %v672 = vunpack.c.l.b16 %v621
    %v673 = vunpack.c.h.b16 %v621
    %v674 = vunpack.c.l.b16 %v622
    %v675 = vunpack.c.h.b16 %v622
    %v676 = vunpack.c.l.b16 %v623
    %v677 = vunpack.c.h.b16 %v623
    %v678 = vunpack.c.l.b16 %v624
    %v679 = vunpack.c.h.b16 %v624
    %v680 = vunpack.c.l.b16 %v625
    %v681 = vunpack.c.h.b16 %v625
    %v682 = vunpack.c.l.b16 %v626
    %v683 = vunpack.c.h.b16 %v626
    %v684 = vunpack.c.l.b16 %v627
    %v685 = vunpack.c.h.b16 %v627
    %v686 = vunpack.c.l.b16 %v628
    %v687 = vunpack.c.h.b16 %v628
    %v688 = vunpack.c.l.b16 %v629
    %v689 = vunpack.c.h.b16 %v629
    %v690 = vpack.c.b16 %v660, %v658
    %v691 = vpack.c.b16 %v661, %v659
    %v692 = vpack.c.b16 %v664, %v662
    %v693 = vpack.c.b16 %v665, %v663
    %v694 = vpack.c.b16 %v668, %v666
    %v695 = vpack.c.b16 %v669, %v667
    %v696 = vpack.c.b16 %v672, %v670
    %v697 = vpack.c.b16 %v673, %v671
    %v698 = vpack.c.b16 %v676, %v674
    %v699 = vpack.c.b16 %v677, %v675
    %v700 = vpack.c.b16 %v680, %v678
    %v701 = vpack.c.b16 %v681, %v679
    %v702 = vpack.c.b16 %v684, %v682
    %v703 = vpack.c.b16 %v685, %v683
    %v704 = vpack.c.b16 %v688, %v686
    %v705 = vpack.c.b16 %v689, %v687
    %722 = vmatprep.subr.bf16.mxu0 %v705
    %723 = vmatpush1.bf16.msra.mxu0 %v704
    %724 = vmatprep.subr.bf16.mxu0 %v703
    %725 = vmatpush1.bf16.msra.mxu0 %v702
    %726 = vmatprep.subr.bf16.mxu0 %v701
    %727 = vmatpush1.bf16.msra.mxu0 %v700
    %728 = vmatprep.subr.bf16.mxu0 %v699
    %729 = vmatpush1.bf16.msra.mxu0 %v698
    %730 = vmatprep.subr.bf16.mxu0 %v697
    %731 = vmatpush1.bf16.msra.mxu0 %v696
    %732 = vmatprep.subr.bf16.mxu0 %v695
    %733 = vmatpush1.bf16.msra.mxu0 %v694
    %734 = vmatprep.subr.bf16.mxu0 %v693
    %735 = vmatpush1.bf16.msra.mxu0 %v692
    %736 = vmatprep.subr.bf16.mxu0 %v691
    %737 = vmatpush1.bf16.msra.mxu0 %v690
    %738 = vmatprep.subr.bf16.mxu0 0
    %739 = vmatpush2.bf16.msra.mxu0 0
    %740 = vmatprep.subr.bf16.mxu0 0
    %741 = vmatpush2.bf16.msra.mxu0 0
    %742 = vmatprep.subr.bf16.mxu0 0
    %743 = vmatpush2.bf16.msra.mxu0 0
    %744 = vmatprep.subr.bf16.mxu0 0
    %745 = vmatpush2.bf16.msra.mxu0 0
    %746 = vmatprep.subr.bf16.mxu0 0
    %747 = vmatpush2.bf16.msra.mxu0 0
    %748 = vmatprep.subr.bf16.mxu0 0
    %749 = vmatpush2.bf16.msra.mxu0 0
    %750 = vmatprep.subr.bf16.mxu0 0
    %751 = vmatpush2.bf16.msra.mxu0 0
    %752 = vmatprep.subr.bf16.mxu0 0
    %753 = vmatpush2.bf16.msra.mxu0 0
    %754 = vmatprep.mubr.bf16.mxu0 0
    %755 = vmatmul.mubr.bf16.gmra.mxu0 %v613
    %v756 = vpop.f32.mrf.mxu0
    %v757 = vadd.f32 %v635, %v756
    %v758 = vpop.f32.mrf.mxu0
    %v759 = vadd.f32 %v639, %v758
    %v760 = vpop.f32.mrf.mxu0
    %v761 = vadd.f32 %v635, %v760
    %v762 = vpop.f32.mrf.mxu0
    %v763 = vadd.f32 %v639, %v762
    %764 = vdwg.mxu0
    %v765 = vmax.f32 %v757, %v759
    %766 = vmax.xlane.f32.xlu0 %v765
    %v767 = vpop.xlane.xlu0 %766
    %v768 = vmax.f32 %v761, %v763
    %769 = vmax.xlane.f32.xlu0 %v768
    %v770 = vpop.xlane.xlu0 %769
    %v771 = vsub.f32 %v757, %v767
    %v772 = vsub.f32 %v759, %v767
    %v773 = vsub.f32 %v761, %v770
    %v774 = vsub.f32 %v763, %v770
    %v775 = vpack.c.bf16 %v773, %v771
    %v776 = vpack.c.bf16 %v774, %v772
    %v778 = vmul.bf16 %v775, 1069105081
    %v779 = vpow.bf16.pop %v778
    %v781 = vmul.bf16 %v776, 1069105081
    %v782 = vpow.bf16.pop %v781
    %v783 = vunpack.c.l.bf16 %v779
    %v784 = vunpack.c.l.bf16 %v782
    %v785 = vunpack.c.h.bf16 %v779
    %v786 = vunpack.c.h.bf16 %v782
    %v787 = vadd.f32 %v783, %v784
    %788 = vadd.xlane.f32.xlu0 %v787
    %v789 = vpop.xlane.xlu0 %788
    %v790 = vadd.f32 %v785, %v786
    %791 = vadd.xlane.f32.xlu0 %v790
    %v792 = vpop.xlane.xlu0 %791
    %v793 = vlog2.pop %v789
    %v794 = vmul.f32 %v793, 0.6931472
    %v795 = vlog2.pop %v792
    %v796 = vmul.f32 %v795, 0.6931472
    %v797 = vadd.f32 %v767, %v794
    %v798 = vadd.f32 %v770, %v796
    %v799 = vsub.f32 %v757, %v797
    %v800 = vsub.f32 %v759, %v797
    %v801 = vsub.f32 %v761, %v798
    %v802 = vsub.f32 %v763, %v798
    %803 = vst [vmem:[#allocation11] sm:$0xff] %v799
    %804 = vst [vmem:[#allocation11 + $0x8] sm:$0xff] %v800
    %805 = vst [vmem:[#allocation11 + $0x10] sm:$0xff] %v801
    %806 = vst [vmem:[#allocation11 + $0x18] sm:$0xff] %v802
    // Predicated region
    $region58: #{tpu_custom_call.1} parent=1 // pred_check
      _
    $region59: #{tpu_custom_call.1} parent=1 // pred_check_branch
      %808 = sbr.rel (0) target = $region61
    $region60: #{tpu_custom_call.1} parent=1 // pred_region
      %s810 = ssub.s32 512, 512
      %811 = vsyncadd [#allocation4], %s810
      %s812 = sshll.u32 [#allocation11], 4
      %s813 = int_to_ptr.vmem [resolvable:$true] %s812
      %818 = dma.vmem_to_hbm [thread:$0]  %s813, 512, %s9, [#allocation4], 256, 256, 16
    $region61: #{tpu_custom_call.1} parent=1 // pred_fallthru
      _
    // Predicated region
    $region62: #{tpu_custom_call.1} parent=1 // pred_check
      _
    $region63: #{tpu_custom_call.1} parent=1 // pred_check_branch
      %820 = sbr.rel (0) target = $region65
    $region64: #{tpu_custom_call.1} parent=1 // pred_region
      %s822 = ssub.s32 256, 256
      %823 = vsyncadd [#allocation13], %s822
      %s824 = sshll.u32 [#allocation12], 4
      %s825 = int_to_ptr.vmem [resolvable:$true] %s824
      %830 = dma.vmem_to_hbm [thread:$0]  %s825, 256, %s10, [#allocation13], 128, 128, 8
    $region65: #{tpu_custom_call.1} parent=1 // pred_fallthru
      _
    // Predicated region
    $region66: #{tpu_custom_call.1} parent=1 // pred_check
      _
    $region67: #{tpu_custom_call.1} parent=1 // pred_check_branch
      %832 = sbr.rel (0) target = $region69
    $region68: #{tpu_custom_call.1} parent=1 // pred_region
      %833 = dma.done [#allocation4], 512
    $region69: #{tpu_custom_call.1} parent=1 // pred_fallthru
      _
    // Predicated region
    $region70: #{tpu_custom_call.1} parent=1 // pred_check
      _
    $region71: #{tpu_custom_call.1} parent=1 // pred_check_branch
      %835 = sbr.rel (0) target = $region73
    $region72: #{tpu_custom_call.1} parent=1 // pred_region
      %836 = dma.done [#allocation13], 256
    $region73: #{tpu_custom_call.1} parent=1 // pred_fallthru
      _
    %837 = vsyncpa [#allocation3], 1
    %838 = vsyncpa [#allocation6], 1
    %839 = vsyncpa [#allocation9], 1
    %840 = vsyncpa [#allocation4], 1
    %841 = vsyncpa [#allocation13], 1

// kernel: tpu_custom_call.1
$region0: #{tpu_custom_call.1}
  #allocation0 [shape = 'u32[]', space=smem, size = 0x4, offset = 0x4, fixed_abs, tag = 'smem constant byte address 0x4 - core index']
  #allocation1 [shape = 'u32[144,128]{1,0:T(1,128)}', space=vmem, size = 0x12000, scoped, tag = 'internal scratch']
  %s0 = inlined_call_operand.hbm [shape: bf16[16,256], index: 0, kind: input, shape index: {}]
  %s1 = inlined_call_operand.hbm [shape: bf16[256,128], index: 1, kind: input, shape index: {}]
  %s2 = inlined_call_operand.vmem [shape: f32[1,128], index: 2, kind: input, shape index: {}]
  %s3 = inlined_call_operand.hbm [shape: bf16[128,128], index: 3, kind: input, shape index: {}]
  %s4 = inlined_call_operand.vmem [shape: f32[1,128], index: 4, kind: input, shape index: {}]
  %s5 = inlined_call_operand.hbm [shape: bf16[128,128], index: 5, kind: input, shape index: {}]
  %s6 = inlined_call_operand.vmem [shape: f32[1,128], index: 6, kind: input, shape index: {}]
  %s7 = inlined_call_operand.hbm [shape: bf16[128,256], index: 7, kind: input, shape index: {}]
  %s8 = inlined_call_operand.vmem [shape: f32[1,256], index: 8, kind: input, shape index: {}]
  %s9 = inlined_call_operand.hbm [shape: f32[16,256], index: 9, kind: output, shape index: {0}]
  %s10 = inlined_call_operand.hbm [shape: f32[16,128], index: 10, kind: output, shape index: {1}]
  %11 = xla_tuple %s9, %s10
  %s12 = sld [smem:[#allocation0]]
  $region74: #{tpu_custom_call.1} parent=0
    _
  %s14 = ssub.s32 1, %s12
  %s15 = scalar_select 0, %s14, %s12
  $region1: #{tpu_custom_call.1} parent=0
    #allocation2 [shape = 'u8[8192]{0}', space=vmem, size = 0x2000, scoped, tag = 'input window, operand 0, single buffered']
    #allocation3 [shape = 's32[1]{0}', space=sflag, size = 0x4, scoped, tag = 'scoped memory for tpu_custom_call.1']
    #allocation4 [shape = 's32[1]{0}', space=sflag, size = 0x4, scoped, tag = 'scoped memory for tpu_custom_call.1']
    #allocation5 [shape = 'u8[65536]{0}', space=vmem, size = 0x10000, scoped, tag = 'input window, operand 1, single buffered']
    #allocation6 [shape = 's32[1]{0}', space=sflag, size = 0x4, scoped, tag = 'scoped memory for tpu_custom_call.1']
    #allocation7 [shape = 'u8[32768]{0}', space=vmem, size = 0x8000, scoped, tag = 'input window, operand 3, single buffered']
    #allocation8 [shape = 'u8[32768]{0}', space=vmem, size = 0x8000, scoped, tag = 'input window, operand 5, single buffered']
    #allocation9 [shape = 's32[1]{0}', space=sflag, size = 0x4, scoped, tag = 'scoped memory for tpu_custom_call.1']
    #allocation10 [shape = 'u8[65536]{0}', space=vmem, size = 0x10000, scoped, tag = 'input window, operand 7, single buffered']
    #allocation11 [shape = 'u8[16384]{0}', space=vmem, size = 0x4000, scoped, tag = 'output window, operand 0, single buffered']
    #allocation12 [shape = 'u8[8192]{0}', space=vmem, size = 0x2000, scoped, tag = 'output window, operand 1, single buffered']
    #allocation13 [shape = 's32[1]{0}', space=sflag, size = 0x4, scoped, tag = 'scoped memory for tpu_custom_call.1']
    %16 = vsyncpa [#allocation3], 0
    %17 = vsyncpa [#allocation6], 0
    %18 = vsyncpa [#allocation9], 0
    %19 = vsyncpa [#allocation4], 0
    %20 = vsyncpa [#allocation13], 0
    // Predicated region
    $region2: #{tpu_custom_call.1} parent=1 // pred_check
      _
    $region3: #{tpu_custom_call.1} parent=1 // pred_check_branch
      %22 = sbr.rel (0) target = $region5
    $region4: #{tpu_custom_call.1} parent=1 // pred_region
      %s24 = ssub.s32 256, 256
      %25 = vsyncadd [#allocation3], %s24
      %s26 = sshll.u32 [#allocation2], 4
      %s27 = int_to_ptr.vmem [resolvable:$true] %s26
      %32 = dma.hbm_to_vmem [thread:$0]  %s0, 256, %s27, [#allocation3], 128, 128, 8
    $region5: #{tpu_custom_call.1} parent=1 // pred_fallthru
      _
    // Predicated region
    $region6: #{tpu_custom_call.1} parent=1 // pred_check
      _
    $region7: #{tpu_custom_call.1} parent=1 // pred_check_branch
      %34 = sbr.rel (0) target = $region9
    $region8: #{tpu_custom_call.1} parent=1 // pred_region
      %s36 = ssub.s32 2048, 2048
      %37 = vsyncadd [#allocation6], %s36
      %s38 = sshll.u32 [#allocation5], 4
      %s39 = int_to_ptr.vmem [resolvable:$true] %s38
      %44 = dma.hbm_to_vmem [thread:$0]  %s1, 2048, %s39, [#allocation6], 64, 64, 4
    $region9: #{tpu_custom_call.1} parent=1 // pred_fallthru
      _
    // Predicated region
    $region10: #{tpu_custom_call.1} parent=1 // pred_check
      _
    $region11: #{tpu_custom_call.1} parent=1 // pred_check_branch
      %46 = sbr.rel (0) target = $region13
    $region12: #{tpu_custom_call.1} parent=1 // pred_region
      _
    $region13: #{tpu_custom_call.1} parent=1 // pred_fallthru
      _
    // Predicated region
    $region14: #{tpu_custom_call.1} parent=1 // pred_check
      _
    $region15: #{tpu_custom_call.1} parent=1 // pred_check_branch
      %48 = sbr.rel (0) target = $region17
    $region16: #{tpu_custom_call.1} parent=1 // pred_region
      %s50 = ssub.s32 1024, 1024
      %51 = vsyncadd [#allocation6], %s50
      %s52 = sshll.u32 [#allocation7], 4
      %s53 = int_to_ptr.vmem [resolvable:$true] %s52
      %58 = dma.hbm_to_vmem [thread:$0]  %s3, 1024, %s53, [#allocation6], 64, 64, 4
    $region17: #{tpu_custom_call.1} parent=1 // pred_fallthru
      _
    // Predicated region
    $region18: #{tpu_custom_call.1} parent=1 // pred_check
      _
    $region19: #{tpu_custom_call.1} parent=1 // pred_check_branch
      %60 = sbr.rel (0) target = $region21
    $region20: #{tpu_custom_call.1} parent=1 // pred_region
      _
    $region21: #{tpu_custom_call.1} parent=1 // pred_fallthru
      _
    // Predicated region
    $region22: #{tpu_custom_call.1} parent=1 // pred_check
      _
    $region23: #{tpu_custom_call.1} parent=1 // pred_check_branch
      %62 = sbr.rel (0) target = $region25
    $region24: #{tpu_custom_call.1} parent=1 // pred_region
      %s64 = ssub.s32 1024, 1024
      %65 = vsyncadd [#allocation9], %s64
      %s66 = sshll.u32 [#allocation8], 4
      %s67 = int_to_ptr.vmem [resolvable:$true] %s66
      %72 = dma.hbm_to_vmem [thread:$0]  %s5, 1024, %s67, [#allocation9], 64, 64, 4
    $region25: #{tpu_custom_call.1} parent=1 // pred_fallthru
      _
    // Predicated region
    $region26: #{tpu_custom_call.1} parent=1 // pred_check
      _
    $region27: #{tpu_custom_call.1} parent=1 // pred_check_branch
      %74 = sbr.rel (0) target = $region29
    $region28: #{tpu_custom_call.1} parent=1 // pred_region
      _
    $region29: #{tpu_custom_call.1} parent=1 // pred_fallthru
      _
    // Predicated region
    $region30: #{tpu_custom_call.1} parent=1 // pred_check
      _
    $region31: #{tpu_custom_call.1} parent=1 // pred_check_branch
      %76 = sbr.rel (0) target = $region33
    $region32: #{tpu_custom_call.1} parent=1 // pred_region
      %s78 = ssub.s32 2048, 2048
      %79 = vsyncadd [#allocation9], %s78
      %s80 = sshll.u32 [#allocation10], 4
      %s81 = int_to_ptr.vmem [resolvable:$true] %s80
      %86 = dma.hbm_to_vmem [thread:$0]  %s7, 2048, %s81, [#allocation9], 128, 128, 8
    $region33: #{tpu_custom_call.1} parent=1 // pred_fallthru
      _
    // Predicated region
    $region34: #{tpu_custom_call.1} parent=1 // pred_check
      _
    $region35: #{tpu_custom_call.1} parent=1 // pred_check_branch
      %88 = sbr.rel (0) target = $region37
    $region36: #{tpu_custom_call.1} parent=1 // pred_region
      _
    $region37: #{tpu_custom_call.1} parent=1 // pred_fallthru
      _
    // Predicated region
    $region38: #{tpu_custom_call.1} parent=1 // pred_check
      _
    $region39: #{tpu_custom_call.1} parent=1 // pred_check_branch
      %90 = sbr.rel (0) target = $region41
    $region40: #{tpu_custom_call.1} parent=1 // pred_region
      %91 = dma.done [#allocation3], 256
    $region41: #{tpu_custom_call.1} parent=1 // pred_fallthru
      _
    // Predicated region
    $region42: #{tpu_custom_call.1} parent=1 // pred_check
      _
    $region43: #{tpu_custom_call.1} parent=1 // pred_check_branch
      %93 = sbr.rel (0) target = $region45
    $region44: #{tpu_custom_call.1} parent=1 // pred_region
      %94 = dma.done [#allocation6], 2048
    $region45: #{tpu_custom_call.1} parent=1 // pred_fallthru
      _
    // Predicated region
    $region46: #{tpu_custom_call.1} parent=1 // pred_check
      _
    $region47: #{tpu_custom_call.1} parent=1 // pred_check_branch
      %96 = sbr.rel (0) target = $region49
    $region48: #{tpu_custom_call.1} parent=1 // pred_region
      %97 = dma.done [#allocation6], 1024
    $region49: #{tpu_custom_call.1} parent=1 // pred_fallthru
      _
    // Predicated region
    $region50: #{tpu_custom_call.1} parent=1 // pred_check
      _
    $region51: #{tpu_custom_call.1} parent=1 // pred_check_branch
      %99 = sbr.rel (0) target = $region53
    $region52: #{tpu_custom_call.1} parent=1 // pred_region
      %100 = dma.done [#allocation9], 1024
    $region53: #{tpu_custom_call.1} parent=1 // pred_fallthru
      _
    // Predicated region
    $region54: #{tpu_custom_call.1} parent=1 // pred_check
      _
    $region55: #{tpu_custom_call.1} parent=1 // pred_check_branch
      %102 = sbr.rel (0) target = $region57
    $region56: #{tpu_custom_call.1} parent=1 // pred_region
      %103 = dma.done [#allocation9], 2048
    $region57: #{tpu_custom_call.1} parent=1 // pred_fallthru
      _
    %v105 = vld [vmem:[#allocation2] sm:$0xff]
    %v106 = vld [vmem:[#allocation2 + $0x8] sm:$0xff]
    %v107 = vld [vmem:[#allocation5] sm:$0xf]
    %v108 = vld [vmem:[#allocation5 + $0x4] sm:$0xf]
    %v109 = vld [vmem:[#allocation5 + $0x8] sm:$0xf]
    %v110 = vld [vmem:[#allocation5 + $0xc] sm:$0xf]
    %v111 = vld [vmem:[#allocation5 + $0x10] sm:$0xf]
    %v112 = vld [vmem:[#allocation5 + $0x14] sm:$0xf]
    %v113 = vld [vmem:[#allocation5 + $0x18] sm:$0xf]
    %v114 = vld [vmem:[#allocation5 + $0x1c] sm:$0xf]
    %v115 = vld [vmem:[#allocation5 + $0x20] sm:$0xf]
    %v116 = vld [vmem:[#allocation5 + $0x24] sm:$0xf]
    %v117 = vld [vmem:[#allocation5 + $0x28] sm:$0xf]
    %v118 = vld [vmem:[#allocation5 + $0x2c] sm:$0xf]
    %v119 = vld [vmem:[#allocation5 + $0x30] sm:$0xf]
    %v120 = vld [vmem:[#allocation5 + $0x34] sm:$0xf]
    %v121 = vld [vmem:[#allocation5 + $0x38] sm:$0xf]
    %v122 = vld [vmem:[#allocation5 + $0x3c] sm:$0xf]
    %v123 = vld [vmem:[#allocation5 + $0x40] sm:$0xf]
    %v124 = vld [vmem:[#allocation5 + $0x44] sm:$0xf]
    %v125 = vld [vmem:[#allocation5 + $0x48] sm:$0xf]
    %v126 = vld [vmem:[#allocation5 + $0x4c] sm:$0xf]
    %v127 = vld [vmem:[#allocation5 + $0x50] sm:$0xf]
    %v128 = vld [vmem:[#allocation5 + $0x54] sm:$0xf]
    %v129 = vld [vmem:[#allocation5 + $0x58] sm:$0xf]
    %v130 = vld [vmem:[#allocation5 + $0x5c] sm:$0xf]
    %v131 = vld [vmem:[#allocation5 + $0x60] sm:$0xf]
    %v132 = vld [vmem:[#allocation5 + $0x64] sm:$0xf]
    %v133 = vld [vmem:[#allocation5 + $0x68] sm:$0xf]
    %v134 = vld [vmem:[#allocation5 + $0x6c] sm:$0xf]
    %v135 = vld [vmem:[#allocation5 + $0x70] sm:$0xf]
    %v136 = vld [vmem:[#allocation5 + $0x74] sm:$0xf]
    %v137 = vld [vmem:[#allocation5 + $0x78] sm:$0xf]
    %v138 = vld [vmem:[#allocation5 + $0x7c] sm:$0xf]
    %v139 = vld [vmem:[%s2] sm:$0x1]
    %v141 = vlaneseq
    %v142 = vshrl.u32 %v141, 7
    %v143 = vsub.s32 0, %v142
    %v144 = vrot.slane %v139, %v143
    %v148 = vunpack.c.l.b16 %v105
    %v149 = vunpack.c.h.b16 %v105
    %v150 = vunpack.c.l.b16 %v106
    %v151 = vunpack.c.h.b16 %v106
    %v152 = vpack.c.b16 %v150, %v148
    %v153 = vpack.c.b16 %v151, %v149
    %v188 = vunpack.c.l.b16 %v107
    %v189 = vunpack.c.l.b16 %v108
    %v190 = vunpack.c.l.b16 %v109
    %v191 = vunpack.c.l.b16 %v110
    %v192 = vunpack.c.l.b16 %v111
    %v193 = vunpack.c.l.b16 %v112
    %v194 = vunpack.c.l.b16 %v113
    %v195 = vunpack.c.l.b16 %v114
    %v196 = vunpack.c.l.b16 %v115
    %v197 = vunpack.c.l.b16 %v116
    %v198 = vunpack.c.l.b16 %v117
    %v199 = vunpack.c.l.b16 %v118
    %v200 = vunpack.c.l.b16 %v119
    %v201 = vunpack.c.l.b16 %v120
    %v202 = vunpack.c.l.b16 %v121
    %v203 = vunpack.c.l.b16 %v122
    %v204 = vunpack.c.l.b16 %v123
    %v205 = vunpack.c.l.b16 %v124
    %v206 = vunpack.c.l.b16 %v125
    %v207 = vunpack.c.l.b16 %v126
    %v208 = vunpack.c.l.b16 %v127
    %v209 = vunpack.c.l.b16 %v128
    %v210 = vunpack.c.l.b16 %v129
    %v211 = vunpack.c.l.b16 %v130
    %v212 = vunpack.c.l.b16 %v131
    %v213 = vunpack.c.l.b16 %v132
    %v214 = vunpack.c.l.b16 %v133
    %v215 = vunpack.c.l.b16 %v134
    %v216 = vunpack.c.l.b16 %v135
    %v217 = vunpack.c.l.b16 %v136
    %v218 = vunpack.c.l.b16 %v137
    %v219 = vunpack.c.l.b16 %v138
    %v220 = vpack.c.b16 %v189, %v188
    %v221 = vpack.c.b16 %v191, %v190
    %v222 = vpack.c.b16 %v193, %v192
    %v223 = vpack.c.b16 %v195, %v194
    %v224 = vpack.c.b16 %v197, %v196
    %v225 = vpack.c.b16 %v199, %v198
    %v226 = vpack.c.b16 %v201, %v200
    %v227 = vpack.c.b16 %v203, %v202
    %v228 = vpack.c.b16 %v205, %v204
    %v229 = vpack.c.b16 %v207, %v206
    %v230 = vpack.c.b16 %v209, %v208
    %v231 = vpack.c.b16 %v211, %v210
    %v232 = vpack.c.b16 %v213, %v212
    %v233 = vpack.c.b16 %v215, %v214
    %v234 = vpack.c.b16 %v217, %v216
    %v235 = vpack.c.b16 %v219, %v218
    %252 = vmatprep.subr.bf16.mxu0 0
    %253 = vmatpush1.bf16.msra.mxu0 %v227
    %254 = vmatprep.subr.bf16.mxu0 0
    %255 = vmatpush1.bf16.msra.mxu0 %v226
    %256 = vmatprep.subr.bf16.mxu0 0
    %257 = vmatpush1.bf16.msra.mxu0 %v225
    %258 = vmatprep.subr.bf16.mxu0 0
    %259 = vmatpush1.bf16.msra.mxu0 %v224
    %260 = vmatprep.subr.bf16.mxu0 0
    %261 = vmatpush1.bf16.msra.mxu0 %v223
    %262 = vmatprep.subr.bf16.mxu0 0
    %263 = vmatpush1.bf16.msra.mxu0 %v222
    %264 = vmatprep.subr.bf16.mxu0 0
    %265 = vmatpush1.bf16.msra.mxu0 %v221
    %266 = vmatprep.subr.bf16.mxu0 0
    %267 = vmatpush1.bf16.msra.mxu0 %v220
    %268 = vmatprep.subr.bf16.mxu0 0
    %269 = vmatpush2.bf16.msra.mxu0 %v235
    %270 = vmatprep.subr.bf16.mxu0 0
    %271 = vmatpush2.bf16.msra.mxu0 %v234
    %272 = vmatprep.subr.bf16.mxu0 0
    %273 = vmatpush2.bf16.msra.mxu0 %v233
    %274 = vmatprep.subr.bf16.mxu0 0
    %275 = vmatpush2.bf16.msra.mxu0 %v232
    %276 = vmatprep.subr.bf16.mxu0 0
    %277 = vmatpush2.bf16.msra.mxu0 %v231
    %278 = vmatprep.subr.bf16.mxu0 0
    %279 = vmatpush2.bf16.msra.mxu0 %v230
    %280 = vmatprep.subr.bf16.mxu0 0
    %281 = vmatpush2.bf16.msra.mxu0 %v229
    %282 = vmatprep.subr.bf16.mxu0 0
    %283 = vmatpush2.bf16.msra.mxu0 %v228
    %284 = vmatprep.mubr.bf16.mxu0 %v153
    %285 = vmatmul.mubr.bf16.gmra.mxu0 %v152
    %v286 = vpop.f32.mrf.mxu0
    %v287 = vadd.f32 %v144, %v286
    %v288 = vpop.f32.mrf.mxu0
    %v289 = vpop.f32.mrf.mxu0
    %v290 = vadd.f32 %v144, %v289
    %v291 = vpop.f32.mrf.mxu0
    %292 = vdwg.mxu0
    %v293 = vmax.f32 %v287, 0.0
    %v294 = vmax.f32 %v290, 0.0
    %vm295 = vcmp.ne.f32.partialorder %v287, %v287
    %vm296 = vcmp.ne.f32.partialorder %v290, %v290
    %v297 = vadd.f32 %v287, 0.0
    %v298 = vadd.f32 %v290, 0.0
    %v299 = vand.u32 2147483647, %v287
    %v300 = vand.u32 2147483647, %v290
    %v301 = vsub.f32 0.0, %v299
    %v302 = vsub.f32 0.0, %v300
    %v303 = vmul.f32 %v301, 1.442695
    %v304 = vpow.pop %v303
    %v305 = vmul.f32 %v302, 1.442695
    %v306 = vpow.pop %v305
    %v307 = vadd.f32 %v304, 1.0
    %v308 = vlog2.pop %v307
    %v309 = vmul.f32 %v308, 0.6931472
    %v310 = vmul.f32 -0.5, %v304
    %v311 = vadd.f32 %v310, 1.0
    %v312 = vmul.f32 %v311, %v304
    %v313 = vand.u32 2147483647, %v304
    %vm314 = vcmp.lt.f32.partialorder %v313, 0.0004427343
    %v315 = vsel %vm314, %v312, %v309
    %v316 = vadd.f32 %v306, 1.0
    %v317 = vlog2.pop %v316
    %v318 = vmul.f32 %v317, 0.6931472
    %v319 = vmul.f32 -0.5, %v306
    %v320 = vadd.f32 %v319, 1.0
    %v321 = vmul.f32 %v320, %v306
    %v322 = vand.u32 2147483647, %v306
    %vm323 = vcmp.lt.f32.partialorder %v322, 0.0004427343
    %v324 = vsel %vm323, %v321, %v318
    %v325 = vadd.f32 %v293, %v315
    %v326 = vadd.f32 %v294, %v324
    %v327 = vsel %vm295, %v297, %v325
    %v328 = vsel %vm296, %v298, %v326
    %v329 = vpack.c.bf16 %v328, %v327
    %v330 = vld [vmem:[#allocation7] sm:$0xf]
    %v331 = vld [vmem:[#allocation7 + $0x4] sm:$0xf]
    %v332 = vld [vmem:[#allocation7 + $0x8] sm:$0xf]
    %v333 = vld [vmem:[#allocation7 + $0xc] sm:$0xf]
    %v334 = vld [vmem:[#allocation7 + $0x10] sm:$0xf]
    %v335 = vld [vmem:[#allocation7 + $0x14] sm:$0xf]
    %v336 = vld [vmem:[#allocation7 + $0x18] sm:$0xf]
    %v337 = vld [vmem:[#allocation7 + $0x1c] sm:$0xf]
    %v338 = vld [vmem:[#allocation7 + $0x20] sm:$0xf]
    %v339 = vld [vmem:[#allocation7 + $0x24] sm:$0xf]
    %v340 = vld [vmem:[#allocation7 + $0x28] sm:$0xf]
    %v341 = vld [vmem:[#allocation7 + $0x2c] sm:$0xf]
    %v342 = vld [vmem:[#allocation7 + $0x30] sm:$0xf]
    %v343 = vld [vmem:[#allocation7 + $0x34] sm:$0xf]
    %v344 = vld [vmem:[#allocation7 + $0x38] sm:$0xf]
    %v345 = vld [vmem:[#allocation7 + $0x3c] sm:$0xf]
    %v346 = vld [vmem:[%s4] sm:$0x1]
    %v348 = vlaneseq
    %v349 = vshrl.u32 %v348, 7
    %v350 = vsub.s32 0, %v349
    %v351 = vrot.slane %v346, %v350
    %v369 = vunpack.c.l.b16 %v330
    %v370 = vunpack.c.l.b16 %v331
    %v371 = vunpack.c.l.b16 %v332
    %v372 = vunpack.c.l.b16 %v333
    %v373 = vunpack.c.l.b16 %v334
    %v374 = vunpack.c.l.b16 %v335
    %v375 = vunpack.c.l.b16 %v336
    %v376 = vunpack.c.l.b16 %v337
    %v377 = vunpack.c.l.b16 %v338
    %v378 = vunpack.c.l.b16 %v339
    %v379 = vunpack.c.l.b16 %v340
    %v380 = vunpack.c.l.b16 %v341
    %v381 = vunpack.c.l.b16 %v342
    %v382 = vunpack.c.l.b16 %v343
    %v383 = vunpack.c.l.b16 %v344
    %v384 = vunpack.c.l.b16 %v345
    %v385 = vpack.c.b16 %v370, %v369
    %v386 = vpack.c.b16 %v372, %v371
    %v387 = vpack.c.b16 %v374, %v373
    %v388 = vpack.c.b16 %v376, %v375
    %v389 = vpack.c.b16 %v378, %v377
    %v390 = vpack.c.b16 %v380, %v379
    %v391 = vpack.c.b16 %v382, %v381
    %v392 = vpack.c.b16 %v384, %v383
    %401 = vmatprep.subr.bf16.mxu0 0
    %402 = vmatpush1.bf16.msra.mxu0 %v392
    %403 = vmatprep.subr.bf16.mxu0 0
    %404 = vmatpush1.bf16.msra.mxu0 %v391
    %405 = vmatprep.subr.bf16.mxu0 0
    %406 = vmatpush1.bf16.msra.mxu0 %v390
    %407 = vmatprep.subr.bf16.mxu0 0
    %408 = vmatpush1.bf16.msra.mxu0 %v389
    %409 = vmatprep.subr.bf16.mxu0 0
    %410 = vmatpush1.bf16.msra.mxu0 %v388
    %411 = vmatprep.subr.bf16.mxu0 0
    %412 = vmatpush1.bf16.msra.mxu0 %v387
    %413 = vmatprep.subr.bf16.mxu0 0
    %414 = vmatpush1.bf16.msra.mxu0 %v386
    %415 = vmatprep.subr.bf16.mxu0 0
    %416 = vmatpush1.bf16.msra.mxu0 %v385
    %417 = vmatprep.subr.bf16.mxu0 0
    %418 = vmatpush2.bf16.msra.mxu0 0
    %419 = vmatprep.subr.bf16.mxu0 0
    %420 = vmatpush2.bf16.msra.mxu0 0
    %421 = vmatprep.subr.bf16.mxu0 0
    %422 = vmatpush2.bf16.msra.mxu0 0
    %423 = vmatprep.subr.bf16.mxu0 0
    %424 = vmatpush2.bf16.msra.mxu0 0
    %425 = vmatprep.subr.bf16.mxu0 0
    %426 = vmatpush2.bf16.msra.mxu0 0
    %427 = vmatprep.subr.bf16.mxu0 0
    %428 = vmatpush2.bf16.msra.mxu0 0
    %429 = vmatprep.subr.bf16.mxu0 0
    %430 = vmatpush2.bf16.msra.mxu0 0
    %431 = vmatprep.subr.bf16.mxu0 0
    %432 = vmatpush2.bf16.msra.mxu0 0
    %433 = vmatprep.mubr.bf16.mxu0 0
    %434 = vmatmul.mubr.bf16.gmra.mxu0 %v329
    %v435 = vpop.f32.mrf.mxu0
    %v436 = vadd.f32 %v351, %v435
    %v437 = vpop.f32.mrf.mxu0
    %v438 = vpop.f32.mrf.mxu0
    %v439 = vadd.f32 %v351, %v438
    %v440 = vpop.f32.mrf.mxu0
    %441 = vdwg.mxu0
    %v442 = vmax.f32 %v436, 0.0
    %v443 = vmax.f32 %v439, 0.0
    %vm444 = vcmp.ne.f32.partialorder %v436, %v436
    %vm445 = vcmp.ne.f32.partialorder %v439, %v439
    %v446 = vadd.f32 %v436, 0.0
    %v447 = vadd.f32 %v439, 0.0
    %v448 = vand.u32 2147483647, %v436
    %v449 = vand.u32 2147483647, %v439
    %v450 = vsub.f32 0.0, %v448
    %v451 = vsub.f32 0.0, %v449
    %v452 = vmul.f32 %v450, 1.442695
    %v453 = vpow.pop %v452
    %v454 = vmul.f32 %v451, 1.442695
    %v455 = vpow.pop %v454
    %v456 = vadd.f32 %v453, 1.0
    %v457 = vlog2.pop %v456
    %v458 = vmul.f32 %v457, 0.6931472
    %v459 = vmul.f32 -0.5, %v453
    %v460 = vadd.f32 %v459, 1.0
    %v461 = vmul.f32 %v460, %v453
    %v462 = vand.u32 2147483647, %v453
    %vm463 = vcmp.lt.f32.partialorder %v462, 0.0004427343
    %v464 = vsel %vm463, %v461, %v458
    %v465 = vadd.f32 %v455, 1.0
    %v466 = vlog2.pop %v465
    %v467 = vmul.f32 %v466, 0.6931472
    %v468 = vmul.f32 -0.5, %v455
    %v469 = vadd.f32 %v468, 1.0
    %v470 = vmul.f32 %v469, %v455
    %v471 = vand.u32 2147483647, %v455
    %vm472 = vcmp.lt.f32.partialorder %v471, 0.0004427343
    %v473 = vsel %vm472, %v470, %v467
    %v474 = vadd.f32 %v442, %v464
    %v475 = vadd.f32 %v443, %v473
    %v476 = vsel %vm444, %v446, %v474
    %v477 = vsel %vm445, %v447, %v475
    %v478 = vpack.c.bf16 %v477, %v476
    %v479 = vld [vmem:[#allocation8] sm:$0xf]
    %v480 = vld [vmem:[#allocation8 + $0x4] sm:$0xf]
    %v481 = vld [vmem:[#allocation8 + $0x8] sm:$0xf]
    %v482 = vld [vmem:[#allocation8 + $0xc] sm:$0xf]
    %v483 = vld [vmem:[#allocation8 + $0x10] sm:$0xf]
    %v484 = vld [vmem:[#allocation8 + $0x14] sm:$0xf]
    %v485 = vld [vmem:[#allocation8 + $0x18] sm:$0xf]
    %v486 = vld [vmem:[#allocation8 + $0x1c] sm:$0xf]
    %v487 = vld [vmem:[#allocation8 + $0x20] sm:$0xf]
    %v488 = vld [vmem:[#allocation8 + $0x24] sm:$0xf]
    %v489 = vld [vmem:[#allocation8 + $0x28] sm:$0xf]
    %v490 = vld [vmem:[#allocation8 + $0x2c] sm:$0xf]
    %v491 = vld [vmem:[#allocation8 + $0x30] sm:$0xf]
    %v492 = vld [vmem:[#allocation8 + $0x34] sm:$0xf]
    %v493 = vld [vmem:[#allocation8 + $0x38] sm:$0xf]
    %v494 = vld [vmem:[#allocation8 + $0x3c] sm:$0xf]
    %v495 = vld [vmem:[%s6] sm:$0x1]
    %v497 = vlaneseq
    %v498 = vshrl.u32 %v497, 7
    %v499 = vsub.s32 0, %v498
    %v500 = vrot.slane %v495, %v499
    %v518 = vunpack.c.l.b16 %v479
    %v519 = vunpack.c.l.b16 %v480
    %v520 = vunpack.c.l.b16 %v481
    %v521 = vunpack.c.l.b16 %v482
    %v522 = vunpack.c.l.b16 %v483
    %v523 = vunpack.c.l.b16 %v484
    %v524 = vunpack.c.l.b16 %v485
    %v525 = vunpack.c.l.b16 %v486
    %v526 = vunpack.c.l.b16 %v487
    %v527 = vunpack.c.l.b16 %v488
    %v528 = vunpack.c.l.b16 %v489
    %v529 = vunpack.c.l.b16 %v490
    %v530 = vunpack.c.l.b16 %v491
    %v531 = vunpack.c.l.b16 %v492
    %v532 = vunpack.c.l.b16 %v493
    %v533 = vunpack.c.l.b16 %v494
    %v534 = vpack.c.b16 %v519, %v518
    %v535 = vpack.c.b16 %v521, %v520
    %v536 = vpack.c.b16 %v523, %v522
    %v537 = vpack.c.b16 %v525, %v524
    %v538 = vpack.c.b16 %v527, %v526
    %v539 = vpack.c.b16 %v529, %v528
    %v540 = vpack.c.b16 %v531, %v530
    %v541 = vpack.c.b16 %v533, %v532
    %550 = vmatprep.subr.bf16.mxu0 0
    %551 = vmatpush1.bf16.msra.mxu0 %v541
    %552 = vmatprep.subr.bf16.mxu0 0
    %553 = vmatpush1.bf16.msra.mxu0 %v540
    %554 = vmatprep.subr.bf16.mxu0 0
    %555 = vmatpush1.bf16.msra.mxu0 %v539
    %556 = vmatprep.subr.bf16.mxu0 0
    %557 = vmatpush1.bf16.msra.mxu0 %v538
    %558 = vmatprep.subr.bf16.mxu0 0
    %559 = vmatpush1.bf16.msra.mxu0 %v537
    %560 = vmatprep.subr.bf16.mxu0 0
    %561 = vmatpush1.bf16.msra.mxu0 %v536
    %562 = vmatprep.subr.bf16.mxu0 0
    %563 = vmatpush1.bf16.msra.mxu0 %v535
    %564 = vmatprep.subr.bf16.mxu0 0
    %565 = vmatpush1.bf16.msra.mxu0 %v534
    %566 = vmatprep.subr.bf16.mxu0 0
    %567 = vmatpush2.bf16.msra.mxu0 0
    %568 = vmatprep.subr.bf16.mxu0 0
    %569 = vmatpush2.bf16.msra.mxu0 0
    %570 = vmatprep.subr.bf16.mxu0 0
    %571 = vmatpush2.bf16.msra.mxu0 0
    %572 = vmatprep.subr.bf16.mxu0 0
    %573 = vmatpush2.bf16.msra.mxu0 0
    %574 = vmatprep.subr.bf16.mxu0 0
    %575 = vmatpush2.bf16.msra.mxu0 0
    %576 = vmatprep.subr.bf16.mxu0 0
    %577 = vmatpush2.bf16.msra.mxu0 0
    %578 = vmatprep.subr.bf16.mxu0 0
    %579 = vmatpush2.bf16.msra.mxu0 0
    %580 = vmatprep.subr.bf16.mxu0 0
    %581 = vmatpush2.bf16.msra.mxu0 0
    %582 = vmatprep.mubr.bf16.mxu0 0
    %583 = vmatmul.mubr.bf16.gmra.mxu0 %v478
    %v584 = vpop.f32.mrf.mxu0
    %v585 = vadd.f32 %v500, %v584
    %v586 = vpop.f32.mrf.mxu0
    %v587 = vpop.f32.mrf.mxu0
    %v588 = vadd.f32 %v500, %v587
    %v589 = vpop.f32.mrf.mxu0
    %590 = vdwg.mxu0
    %v591 = vmul.f32 %v585, 1.442695
    %v592 = vpow.pop %v591
    %v593 = vmul.f32 %v588, 1.442695
    %v594 = vpow.pop %v593
    %595 = vst [vmem:[#allocation12] sm:$0xff] %v592
    %596 = vst [vmem:[#allocation12 + $0x8] sm:$0xff] %v594
    %597 = vadd.xlane.f32.xlu0 %v592
    %v598 = vpop.xlane.xlu0 %597
    %599 = vadd.xlane.f32.xlu0 %v594
    %v600 = vpop.xlane.xlu0 %599
    %v601 = vmax.f32 %v598, 1e-30
    %v602 = vmax.f32 %v600, 1e-30
    %v603 = vrcp.pop %v601
    %v604 = vrcp.pop %v602
    %v605 = vmul.f32 %v601, %v603
    %v606 = vmul.f32 %v602, %v604
    %v607 = vrcp.pop %v605
    %v608 = vrcp.pop %v606
    %v609 = vmul.f32 %v603, %v607
    %v610 = vmul.f32 %v604, %v608
    %v611 = vmul.f32 %v592, %v609
    %v612 = vmul.f32 %v594, %v610
    %v613 = vpack.c.bf16 %v612, %v611
    %v614 = vld [vmem:[#allocation10] sm:$0xff]
    %v615 = vld [vmem:[#allocation10 + $0x8] sm:$0xff]
    %v616 = vld [vmem:[#allocation10 + $0x10] sm:$0xff]
    %v617 = vld [vmem:[#allocation10 + $0x18] sm:$0xff]
    %v618 = vld [vmem:[#allocation10 + $0x20] sm:$0xff]
    %v619 = vld [vmem:[#allocation10 + $0x28] sm:$0xff]
    %v620 = vld [vmem:[#allocation10 + $0x30] sm:$0xff]
    %v621 = vld [vmem:[#allocation10 + $0x38] sm:$0xff]
    %v622 = vld [vmem:[#allocation10 + $0x40] sm:$0xff]
    %v623 = vld [vmem:[#allocation10 + $0x48] sm:$0xff]
    %v624 = vld [vmem:[#allocation10 + $0x50] sm:$0xff]
    %v625 = vld [vmem:[#allocation10 + $0x58] sm:$0xff]
    %v626 = vld [vmem:[#allocation10 + $0x60] sm:$0xff]
    %v627 = vld [vmem:[#allocation10 + $0x68] sm:$0xff]
    %v628 = vld [vmem:[#allocation10 + $0x70] sm:$0xff]
    %v629 = vld [vmem:[#allocation10 + $0x78] sm:$0xff]
    %v630 = vld [vmem:[%s8] sm:$0x3]
    %v632 = vlaneseq
    %v633 = vshrl.u32 %v632, 7
    %v634 = vsub.s32 0, %v633
    %v635 = vrot.slane %v630, %v634
    %v636 = vlaneseq
    %v637 = vshrl.u32 %v636, 7
    %v638 = vsub.s32 1, %v637
    %v639 = vrot.slane %v630, %v638
    %v658 = vunpack.c.l.b16 %v614
    %v659 = vunpack.c.h.b16 %v614
    %v660 = vunpack.c.l.b16 %v615
    %v661 = vunpack.c.h.b16 %v615
    %v662 = vunpack.c.l.b16 %v616
    %v663 = vunpack.c.h.b16 %v616
    %v664 = vunpack.c.l.b16 %v617
    %v665 = vunpack.c.h.b16 %v617
    %v666 = vunpack.c.l.b16 %v618
    %v667 = vunpack.c.h.b16 %v618
    %v668 = vunpack.c.l.b16 %v619
    %v669 = vunpack.c.h.b16 %v619
    %v670 = vunpack.c.l.b16 %v620
    %v671 = vunpack.c.h.b16 %v620
    %v672 = vunpack.c.l.b16 %v621
    %v673 = vunpack.c.h.b16 %v621
    %v674 = vunpack.c.l.b16 %v622
    %v675 = vunpack.c.h.b16 %v622
    %v676 = vunpack.c.l.b16 %v623
    %v677 = vunpack.c.h.b16 %v623
    %v678 = vunpack.c.l.b16 %v624
    %v679 = vunpack.c.h.b16 %v624
    %v680 = vunpack.c.l.b16 %v625
    %v681 = vunpack.c.h.b16 %v625
    %v682 = vunpack.c.l.b16 %v626
    %v683 = vunpack.c.h.b16 %v626
    %v684 = vunpack.c.l.b16 %v627
    %v685 = vunpack.c.h.b16 %v627
    %v686 = vunpack.c.l.b16 %v628
    %v687 = vunpack.c.h.b16 %v628
    %v688 = vunpack.c.l.b16 %v629
    %v689 = vunpack.c.h.b16 %v629
    %v690 = vpack.c.b16 %v660, %v658
    %v691 = vpack.c.b16 %v661, %v659
    %v692 = vpack.c.b16 %v664, %v662
    %v693 = vpack.c.b16 %v665, %v663
    %v694 = vpack.c.b16 %v668, %v666
    %v695 = vpack.c.b16 %v669, %v667
    %v696 = vpack.c.b16 %v672, %v670
    %v697 = vpack.c.b16 %v673, %v671
    %v698 = vpack.c.b16 %v676, %v674
    %v699 = vpack.c.b16 %v677, %v675
    %v700 = vpack.c.b16 %v680, %v678
    %v701 = vpack.c.b16 %v681, %v679
    %v702 = vpack.c.b16 %v684, %v682
    %v703 = vpack.c.b16 %v685, %v683
    %v704 = vpack.c.b16 %v688, %v686
    %v705 = vpack.c.b16 %v689, %v687
    %722 = vmatprep.subr.bf16.mxu0 %v705
    %723 = vmatpush1.bf16.msra.mxu0 %v704
    %724 = vmatprep.subr.bf16.mxu0 %v703
    %725 = vmatpush1.bf16.msra.mxu0 %v702
    %726 = vmatprep.subr.bf16.mxu0 %v701
    %727 = vmatpush1.bf16.msra.mxu0 %v700
    %728 = vmatprep.subr.bf16.mxu0 %v699
    %729 = vmatpush1.bf16.msra.mxu0 %v698
    %730 = vmatprep.subr.bf16.mxu0 %v697
    %731 = vmatpush1.bf16.msra.mxu0 %v696
    %732 = vmatprep.subr.bf16.mxu0 %v695
    %733 = vmatpush1.bf16.msra.mxu0 %v694
    %734 = vmatprep.subr.bf16.mxu0 %v693
    %735 = vmatpush1.bf16.msra.mxu0 %v692
    %736 = vmatprep.subr.bf16.mxu0 %v691
    %737 = vmatpush1.bf16.msra.mxu0 %v690
    %738 = vmatprep.subr.bf16.mxu0 0
    %739 = vmatpush2.bf16.msra.mxu0 0
    %740 = vmatprep.subr.bf16.mxu0 0
    %741 = vmatpush2.bf16.msra.mxu0 0
    %742 = vmatprep.subr.bf16.mxu0 0
    %743 = vmatpush2.bf16.msra.mxu0 0
    %744 = vmatprep.subr.bf16.mxu0 0
    %745 = vmatpush2.bf16.msra.mxu0 0
    %746 = vmatprep.subr.bf16.mxu0 0
    %747 = vmatpush2.bf16.msra.mxu0 0
    %748 = vmatprep.subr.bf16.mxu0 0
    %749 = vmatpush2.bf16.msra.mxu0 0
    %750 = vmatprep.subr.bf16.mxu0 0
    %751 = vmatpush2.bf16.msra.mxu0 0
    %752 = vmatprep.subr.bf16.mxu0 0
    %753 = vmatpush2.bf16.msra.mxu0 0
    %754 = vmatprep.mubr.bf16.mxu0 0
    %755 = vmatmul.mubr.bf16.gmra.mxu0 %v613
    %v756 = vpop.f32.mrf.mxu0
    %v757 = vadd.f32 %v635, %v756
    %v758 = vpop.f32.mrf.mxu0
    %v759 = vadd.f32 %v639, %v758
    %v760 = vpop.f32.mrf.mxu0
    %v761 = vadd.f32 %v635, %v760
    %v762 = vpop.f32.mrf.mxu0
    %v763 = vadd.f32 %v639, %v762
    %764 = vdwg.mxu0
    %v765 = vmax.f32 %v757, %v759
    %766 = vmax.xlane.f32.xlu0 %v765
    %v767 = vpop.xlane.xlu0 %766
    %v768 = vmax.f32 %v761, %v763
    %769 = vmax.xlane.f32.xlu0 %v768
    %v770 = vpop.xlane.xlu0 %769
    %v771 = vsub.f32 %v757, %v767
    %v772 = vsub.f32 %v759, %v767
    %v773 = vsub.f32 %v761, %v770
    %v774 = vsub.f32 %v763, %v770
    %v775 = vpack.c.bf16 %v773, %v771
    %v776 = vpack.c.bf16 %v774, %v772
    %v778 = vmul.bf16 %v775, 1069105081
    %v779 = vpow.bf16.pop %v778
    %v781 = vmul.bf16 %v776, 1069105081
    %v782 = vpow.bf16.pop %v781
    %v783 = vunpack.c.l.bf16 %v779
    %v784 = vunpack.c.l.bf16 %v782
    %v785 = vunpack.c.h.bf16 %v779
    %v786 = vunpack.c.h.bf16 %v782
    %v787 = vadd.f32 %v783, %v784
    %788 = vadd.xlane.f32.xlu0 %v787
    %v789 = vpop.xlane.xlu0 %788
    %v790 = vadd.f32 %v785, %v786
    %791 = vadd.xlane.f32.xlu0 %v790
    %v792 = vpop.xlane.xlu0 %791
    %v793 = vlog2.pop %v789
    %v794 = vmul.f32 %v793, 0.6931472
    %v795 = vlog2.pop %v792
    %v796 = vmul.f32 %v795, 0.6931472
    %v797 = vadd.f32 %v767, %v794
    %v798 = vadd.f32 %v770, %v796
    %v799 = vsub.f32 %v757, %v797
    %v800 = vsub.f32 %v759, %v797
    %v801 = vsub.f32 %v761, %v798
    %v802 = vsub.f32 %v763, %v798
    %803 = vst [vmem:[#allocation11] sm:$0xff] %v799
    %804 = vst [vmem:[#allocation11 + $0x8] sm:$0xff] %v800
    %805 = vst [vmem:[#allocation11 + $0x10] sm:$0xff] %v801
    %806 = vst [vmem:[#allocation11 + $0x18] sm:$0xff] %v802
    // Predicated region
    $region58: #{tpu_custom_call.1} parent=1 // pred_check
      _
    $region59: #{tpu_custom_call.1} parent=1 // pred_check_branch
      %808 = sbr.rel (0) target = $region61
    $region60: #{tpu_custom_call.1} parent=1 // pred_region
      %s810 = ssub.s32 512, 512
      %811 = vsyncadd [#allocation4], %s810
      %s812 = sshll.u32 [#allocation11], 4
      %s813 = int_to_ptr.vmem [resolvable:$true] %s812
      %818 = dma.vmem_to_hbm [thread:$0]  %s813, 512, %s9, [#allocation4], 256, 256, 16
    $region61: #{tpu_custom_call.1} parent=1 // pred_fallthru
      _
    // Predicated region
    $region62: #{tpu_custom_call.1} parent=1 // pred_check
      _
    $region63: #{tpu_custom_call.1} parent=1 // pred_check_branch
      %820 = sbr.rel (0) target = $region65
    $region64: #{tpu_custom_call.1} parent=1 // pred_region
      %s822 = ssub.s32 256, 256
      %823 = vsyncadd [#allocation13], %s822
      %s824 = sshll.u32 [#allocation12], 4
      %s825 = int_to_ptr.vmem [resolvable:$true] %s824
      %830 = dma.vmem_to_hbm [thread:$0]  %s825, 256, %s10, [#allocation13], 128, 128, 8
    $region65: #{tpu_custom_call.1} parent=1 // pred_fallthru
      _
    // Predicated region
    $region66: #{tpu_custom_call.1} parent=1 // pred_check
      _
    $region67: #{tpu_custom_call.1} parent=1 // pred_check_branch
      %832 = sbr.rel (0) target = $region69
    $region68: #{tpu_custom_call.1} parent=1 // pred_region
      %833 = dma.done [#allocation4], 512
    $region69: #{tpu_custom_call.1} parent=1 // pred_fallthru
      _
    // Predicated region
    $region70: #{tpu_custom_call.1} parent=1 // pred_check
      _
    $region71: #{tpu_custom_call.1} parent=1 // pred_check_branch
      %835 = sbr.rel (0) target = $region73
    $region72: #{tpu_custom_call.1} parent=1 // pred_region
      %836 = dma.done [#allocation13], 256
    $region73: #{tpu_custom_call.1} parent=1 // pred_fallthru
      _
    %837 = vsyncpa [#allocation3], 1
    %838 = vsyncpa [#allocation6], 1
    %839 = vsyncpa [#allocation9], 1
    %840 = vsyncpa [#allocation4], 1
    %841 = vsyncpa [#allocation13], 1

</llo_original>
